<compile_context>
chip_gen: v7x
topology: tpu7x:2x2x1
jax: 0.10.0
libtpu: 0.0.40
codegen_flags: <defaults>
</compile_context>

<pallas_src>
import functools

import jax
import jax.numpy as jnp
from jax import lax
from jax.experimental import pallas as pl
from jax.experimental.pallas import tpu as pltpu


_TRANS_B_DIMS = (((1,), (1,)), ((), ()))  # contract last dims: lhs @ rhs.T


def _mlp_kernel(x_ref, w1_ref, b1_ref, w2_ref, b2_ref, w3_ref, b3_ref, o_ref):
    """Fused forward for one (tile_b, D) batch tile.

    x arrives as f32 straight from HBM (single HBM pass) and is cast to bf16
    here; weights are already bf16. Accumulation, biases and activations are
    f32. Output block is a lane-dense (1, tile_b) row.
    """
    x = x_ref[...].astype(jnp.bfloat16)                         # (TB, D) bf16

    # fc1 + ReLU
    h1 = jnp.dot(x, w1_ref[...], preferred_element_type=jnp.float32)
    h1 = jnp.maximum(h1 + b1_ref[...], 0.0)                     # (TB, 128) f32

    # fc2 + ReLU
    h2 = jnp.dot(h1.astype(jnp.bfloat16), w2_ref[...],
                 preferred_element_type=jnp.float32)
    h2 = jnp.maximum(h2 + b2_ref[...], 0.0)                     # (TB, 64) f32

    # fc3 (out_features == 1): w3_row @ h2^T so the result is a lane-dense
    # (1, TB) row rather than a (TB, 1) column of masked 1-of-128-lane stores.
    h3 = lax.dot_general(w3_ref[...], h2.astype(jnp.bfloat16),
                         dimension_numbers=_TRANS_B_DIMS,
                         preferred_element_type=jnp.float32)    # (1, TB) f32
    h3 = h3 + b3_ref[...]                                       # b3 is (1, 1)

    o_ref[...] = jax.nn.sigmoid(h3).astype(o_ref.dtype)         # unmasked vst


def _round_up(n, m):
    return -(-n // m) * m


def _tpu_generation_info():
    """Return (num_tensorcores_per_chip, conservative scoped-VMEM budget)."""
    try:
        kind = jax.devices()[0].device_kind.lower()
    except Exception:  # pragma: no cover - e.g. no devices during tracing
        kind = ""
    is_v7 = "v7" in kind
    if is_v7:
        # 64 MiB physical / 32 MiB default scoped VMEM -> tighter budget.
        return 2, 20 << 20
    if "v5" in kind:
        # v5e default scoped VMEM is only 16 MiB.
        return 1, 12 << 20
    # v6e (and a safe default): 128 MiB physical, 32 MiB default scoped.
    return 1, 24 << 20


def _pick_tile_b(batch, feat_dim, num_tc, vmem_budget):
    """Pick a batch tile for the grid.

    Lane-dense (1, tile_b) output blocks need tile_b % 128 == 0 (or a single
    full-batch tile).  Single-TC chips: take the largest tile that fits the
    VMEM budget (ideally one full-batch tile).  v7x (2 TCs): prefer an even
    number of maximal tiles so both cores get equal work.
    """
    def fits(tb):
        # x tile (f32, lane-padded to 128) + (1, tb) f32 output row
        # (sublane-padded to 8), both double-buffered by BlockSpec, plus a
        # small cushion for the VMEM-resident weights/biases.
        x_buf = tb * max(_round_up(feat_dim, 128), 128) * 4
        o_buf = 8 * tb * 4
        return 2 * (x_buf + o_buf) + (1 << 20) <= vmem_budget

    if batch % 128 != 0:
        # Small / ragged batch: a single full-batch tile (block == full array
        # dims is always a legal BlockSpec).
        return batch

    # Candidate tile sizes: multiples of 128 that divide the batch, largest first.
    candidates = [t for t in range(batch, 0, -128) if batch % t == 0]

    if num_tc == 2:
        # v7x: even number of tiles so both TensorCores get equal work.
        for t in candidates:
            steps = batch // t
            if steps >= 2 and steps % 2 == 0 and fits(t):
                return t

    for t in candidates:
        if fits(t):
            return t
    return 128


def prepare_params(params):
    """One-time conversion of params into kernel-ready dtypes/layouts.

    Do this ONCE (at init / load time), not per forward call: weights go to
    bf16 (MXU inputs), w3 to its (1, H2) row form, biases stay f32.
    """
    h2 = params["w2"].shape[1]
    return {
        "w1": params["w1"].astype(jnp.bfloat16),
        "b1": params["b1"].astype(jnp.float32),
        "w2": params["w2"].astype(jnp.bfloat16),
        "b2": params["b2"].astype(jnp.float32),
        "w3": params["w3"].reshape(1, h2).astype(jnp.bfloat16),
        "b3": params["b3"].reshape(1, 1).astype(jnp.float32),
    }


@functools.partial(jax.jit, static_argnames=("tile_b",))
def _forward_jit(x, kp, *, tile_b):
    B, D = x.shape
    H1 = kp["w1"].shape[1]
    H2 = kp["w2"].shape[1]
    num_tiles = B // tile_b

    out = pl.pallas_call(
        _mlp_kernel,
        out_shape=jax.ShapeDtypeStruct((1, B), jnp.float32),
        grid_spec=pl.GridSpec(
            grid=(num_tiles,),
            in_specs=[
                pl.BlockSpec((tile_b, D), lambda i: (i, 0)),   # x tile (streamed, f32)
                pl.BlockSpec((D, H1), lambda i: (0, 0)),       # w1 (VMEM-resident)
                pl.BlockSpec((1, H1), lambda i: (0, 0)),       # b1
                pl.BlockSpec((H1, H2), lambda i: (0, 0)),      # w2
                pl.BlockSpec((1, H2), lambda i: (0, 0)),       # b2
                pl.BlockSpec((1, H2), lambda i: (0, 0)),       # w3 (row form)
                pl.BlockSpec((1, 1), lambda i: (0, 0)),        # b3
            ],
            out_specs=pl.BlockSpec((1, tile_b), lambda i: (0, i)),
        ),
        compiler_params=pltpu.CompilerParams(
            dimension_semantics=("parallel",),
        ),
    )(x, kp["w1"], kp["b1"], kp["w2"], kp["b2"], kp["w3"], kp["b3"])

    # Lane-dense (1, B) slab -> (B, 1) to match the PyTorch module's output.
    return out.reshape(B, 1)


def multilayer_net_forward(x, kernel_params, *, tile_b=None):
    """Pallas forward for MultiLayerNet.

    x: (B, D) float32.
    kernel_params: output of `prepare_params` (bf16 weights, f32 biases,
                   w3 in (1, 64) row form).
    Returns (B, 1) float32, matching the PyTorch module.
    """
    B, D = x.shape
    if tile_b is None:
        num_tc, vmem_budget = _tpu_generation_info()
        tile_b = _pick_tile_b(B, D, num_tc, vmem_budget)
    assert B % tile_b == 0, f"batch {B} must be a multiple of tile_b {tile_b}"
    assert tile_b % 128 == 0 or tile_b == B, (
        f"tile_b {tile_b} must be a multiple of 128 (or the full batch) for "
        f"the lane-dense output store")
    return _forward_jit(x, kernel_params, tile_b=tile_b)


def init_params(key, input_dim):
    """Deterministic init mirroring nn.Linear default (uniform +-1/sqrt(fan_in)).

    Weights are stored as (in_features, out_features), i.e. the transpose of
    PyTorch's (out, in) layout.
    """
    dims = [(input_dim, 128), (128, 64), (64, 1)]
    params = {}
    for n, (fan_in, fan_out) in enumerate(dims, start=1):
        key, kw, kb = jax.random.split(key, 3)
        bound = 1.0 / jnp.sqrt(float(fan_in))
        params[f"w{n}"] = jax.random.uniform(
            kw, (fan_in, fan_out), jnp.float32, minval=-bound, maxval=bound)
        params[f"b{n}"] = jax.random.uniform(
            kb, (1, fan_out), jnp.float32, minval=-bound, maxval=bound)
    return params


def _reference_forward(x, params):
    h1 = jnp.maximum(x @ params["w1"] + params["b1"], 0.0)
    h2 = jnp.maximum(h1 @ params["w2"] + params["b2"], 0.0)
    return jax.nn.sigmoid(h2 @ params["w3"] + params["b3"])


if __name__ == "__main__":
    key = jax.random.PRNGKey(0)
    k_x, k_p = jax.random.split(key)

    B, INPUT_DIM = 1024, 32   # small but large enough to exercise the tiling
    x = jax.random.normal(k_x, (B, INPUT_DIM), dtype=jnp.float32)
    params = init_params(k_p, INPUT_DIM)
    kparams = prepare_params(params)   # one-time cast/layout prep (not per call)

    out = multilayer_net_forward(x, kparams)   # generation-aware tile_b
    out = jax.block_until_ready(out)

    ref = _reference_forward(x, params)
    assert out.shape == (B, 1)
    # Looser tolerance than the f32 reference because the MXU inputs are bf16.
    assert jnp.allclose(out, ref, atol=2e-2, rtol=0.0), (
        f"max abs err {float(jnp.max(jnp.abs(out - ref)))}")

    print("KERNEL_OK")
</pallas_src>

<mosaic_0001>
module attributes {stable_mosaic.version = 11 : i64} {
  func.func @_mlp_kernel(%arg0: i32, %arg1: memref<1024x32xf32, #tpu.memory_space<vmem>>, %arg2: memref<32x128xbf16, #tpu.memory_space<vmem>>, %arg3: memref<1x128xf32, #tpu.memory_space<vmem>>, %arg4: memref<128x64xbf16, #tpu.memory_space<vmem>>, %arg5: memref<1x64xf32, #tpu.memory_space<vmem>>, %arg6: memref<1x64xbf16, #tpu.memory_space<vmem>>, %arg7: memref<1x1xf32, #tpu.memory_space<vmem>>, %arg8: memref<1x1024xf32, #tpu.memory_space<vmem>>) attributes {dimension_semantics = [#tpu.dimension_semantics<parallel>], iteration_bounds = array<i64: 1>, scalar_prefetch = 0 : i64, scratch_operands = 0 : i64, tpu.core_type = #tpu.core_type<tc>, window_params = [{transform_indices = @transform_0, window_bounds = array<i64: 1024, 32>}, {pipeline_mode = #tpu.pipeline_mode<synchronous>, transform_indices = @transform_1, window_bounds = array<i64: 32, 128>}, {pipeline_mode = #tpu.pipeline_mode<synchronous>, transform_indices = @transform_2, window_bounds = array<i64: 1, 128>}, {pipeline_mode = #tpu.pipeline_mode<synchronous>, transform_indices = @transform_3, window_bounds = array<i64: 128, 64>}, {pipeline_mode = #tpu.pipeline_mode<synchronous>, transform_indices = @transform_4, window_bounds = array<i64: 1, 64>}, {pipeline_mode = #tpu.pipeline_mode<synchronous>, transform_indices = @transform_5, window_bounds = array<i64: 1, 64>}, {pipeline_mode = #tpu.pipeline_mode<synchronous>, transform_indices = @transform_6, window_bounds = array<i64: 1, 1>}, {transform_indices = @transform_7, window_bounds = array<i64: 1, 1024>}]} {
    %c0 = arith.constant 0 : index
    %c0_0 = arith.constant 0 : index
    %0 = vector.load %arg1[%c0, %c0_0] : memref<1024x32xf32, #tpu.memory_space<vmem>>, vector<1024x32xf32>
    %1 = arith.truncf %0 : vector<1024x32xf32> to vector<1024x32xbf16>
    %c0_1 = arith.constant 0 : index
    %c0_2 = arith.constant 0 : index
    %2 = vector.load %arg2[%c0_1, %c0_2] : memref<32x128xbf16, #tpu.memory_space<vmem>>, vector<32x128xbf16>
    %cst = arith.constant dense<0.000000e+00> : vector<1024x128xf32>
    %3 = tpu.matmul %1, %2, %cst {dimension_numbers = #tpu.dot_dimension_numbers<[1], [0], [0], [1], [0, 0, 1, 1], [], []>} : vector<1024x32xbf16>, vector<32x128xbf16>, vector<1024x128xf32> -> vector<1024x128xf32>
    %c0_3 = arith.constant 0 : index
    %c0_4 = arith.constant 0 : index
    %4 = vector.load %arg3[%c0_3, %c0_4] : memref<1x128xf32, #tpu.memory_space<vmem>>, vector<1x128xf32>
    %5 = vector.broadcast %4 : vector<1x128xf32> to vector<1024x128xf32>
    %6 = arith.addf %3, %5 : vector<1024x128xf32>
    %cst_5 = arith.constant 0.000000e+00 : f32
    %7 = vector.broadcast %cst_5 : f32 to vector<1024x128xf32>
    %8 = arith.maximumf %6, %7 : vector<1024x128xf32>
    %9 = arith.truncf %8 : vector<1024x128xf32> to vector<1024x128xbf16>
    %c0_6 = arith.constant 0 : index
    %c0_7 = arith.constant 0 : index
    %10 = vector.load %arg4[%c0_6, %c0_7] : memref<128x64xbf16, #tpu.memory_space<vmem>>, vector<128x64xbf16>
    %cst_8 = arith.constant dense<0.000000e+00> : vector<1024x64xf32>
    %11 = tpu.matmul %9, %10, %cst_8 {dimension_numbers = #tpu.dot_dimension_numbers<[1], [0], [0], [1], [0, 0, 1, 1], [], []>} : vector<1024x128xbf16>, vector<128x64xbf16>, vector<1024x64xf32> -> vector<1024x64xf32>
    %c0_9 = arith.constant 0 : index
    %c0_10 = arith.constant 0 : index
    %12 = vector.load %arg5[%c0_9, %c0_10] : memref<1x64xf32, #tpu.memory_space<vmem>>, vector<1x64xf32>
    %13 = vector.broadcast %12 : vector<1x64xf32> to vector<1024x64xf32>
    %14 = arith.addf %11, %13 : vector<1024x64xf32>
    %cst_11 = arith.constant 0.000000e+00 : f32
    %15 = vector.broadcast %cst_11 : f32 to vector<1024x64xf32>
    %16 = arith.maximumf %14, %15 : vector<1024x64xf32>
    %c0_12 = arith.constant 0 : index
    %c0_13 = arith.constant 0 : index
    %17 = vector.load %arg6[%c0_12, %c0_13] : memref<1x64xbf16, #tpu.memory_space<vmem>>, vector<1x64xbf16>
    %18 = arith.truncf %16 : vector<1024x64xf32> to vector<1024x64xbf16>
    %cst_14 = arith.constant dense<0.000000e+00> : vector<1x1024xf32>
    %19 = tpu.matmul %17, %18, %cst_14 {dimension_numbers = #tpu.dot_dimension_numbers<[1], [1], [0], [0], [0, 0, 1, 0], [], []>} : vector<1x64xbf16>, vector<1024x64xbf16>, vector<1x1024xf32> -> vector<1x1024xf32>
    %c0_15 = arith.constant 0 : index
    %c0_16 = arith.constant 0 : index
    %20 = vector.load %arg7[%c0_15, %c0_16] : memref<1x1xf32, #tpu.memory_space<vmem>>, vector<1x1xf32>
    %21 = vector.broadcast %20 : vector<1x1xf32> to vector<1x1024xf32>
    %22 = arith.addf %19, %21 : vector<1x1024xf32>
    %23 = arith.negf %22 : vector<1x1024xf32>
    %24 = math.exp %23 : vector<1x1024xf32>
    %cst_17 = arith.constant 1.000000e+00 : f32
    %25 = vector.broadcast %cst_17 : f32 to vector<1x1024xf32>
    %26 = arith.addf %25, %24 : vector<1x1024xf32>
    %27 = arith.divf %25, %26 : vector<1x1024xf32>
    %c0_18 = arith.constant 0 : index
    %c0_19 = arith.constant 0 : index
    %28 = vector.load %arg8[%c0_18, %c0_19] : memref<1x1024xf32, #tpu.memory_space<vmem>>, vector<1x1024xf32>
    tpu.vector_store %arg8[%c0_18, %c0_19], %27 {strides = array<i32>} : memref<1x1024xf32, #tpu.memory_space<vmem>>, vector<1x1024xf32>,
    return
  }
  func.func @transform_0(%arg0: i32) -> (i32, i32) {
    %c0_i32 = arith.constant 0 : i32
    %c0_i32_0 = arith.constant 0 : i32
    return %arg0, %c0_i32 : i32, i32
  }
  func.func @transform_1(%arg0: i32) -> (i32, i32) {
    %c0_i32 = arith.constant 0 : i32
    %c0_i32_0 = arith.constant 0 : i32
    %c0_i32_1 = arith.constant 0 : i32
    return %c0_i32, %c0_i32_0 : i32, i32
  }
  func.func @transform_2(%arg0: i32) -> (i32, i32) {
    %c0_i32 = arith.constant 0 : i32
    %c0_i32_0 = arith.constant 0 : i32
    %c0_i32_1 = arith.constant 0 : i32
    return %c0_i32, %c0_i32_0 : i32, i32
  }
  func.func @transform_3(%arg0: i32) -> (i32, i32) {
    %c0_i32 = arith.constant 0 : i32
    %c0_i32_0 = arith.constant 0 : i32
    %c0_i32_1 = arith.constant 0 : i32
    return %c0_i32, %c0_i32_0 : i32, i32
  }
  func.func @transform_4(%arg0: i32) -> (i32, i32) {
    %c0_i32 = arith.constant 0 : i32
    %c0_i32_0 = arith.constant 0 : i32
    %c0_i32_1 = arith.constant 0 : i32
    return %c0_i32, %c0_i32_0 : i32, i32
  }
  func.func @transform_5(%arg0: i32) -> (i32, i32) {
    %c0_i32 = arith.constant 0 : i32
    %c0_i32_0 = arith.constant 0 : i32
    %c0_i32_1 = arith.constant 0 : i32
    return %c0_i32, %c0_i32_0 : i32, i32
  }
  func.func @transform_6(%arg0: i32) -> (i32, i32) {
    %c0_i32 = arith.constant 0 : i32
    %c0_i32_0 = arith.constant 0 : i32
    %c0_i32_1 = arith.constant 0 : i32
    return %c0_i32, %c0_i32_0 : i32, i32
  }
  func.func @transform_7(%arg0: i32) -> (i32, i32) {
    %c0_i32 = arith.constant 0 : i32
    %c0_i32_0 = arith.constant 0 : i32
    return %c0_i32, %arg0 : i32, i32
  }
}

</mosaic_0001>

<llo_original>
// kernel: _forward_jit.1
$region0: #{_forward_jit.1}
  #allocation0 [shape = 'u32[]', space=smem, size = 0x4, offset = 0x4, fixed_abs, tag = 'smem constant byte address 0x4 - core index']
  #allocation1 [shape = 'u32[144,128]{1,0:T(1,128)}', space=vmem, size = 0x12000, scoped, tag = 'internal scratch']
  #allocation2 [shape = 'f32[1,1]{1,0:T(1,128)S(1)}', space=vmem, size = 0x200, scoped, tag = 'scoped memory for _forward_jit.1']
  %s0 = inlined_call_operand.vmem [shape: f32[1024,32], index: 0, kind: input, shape index: {}]
  %s1 = inlined_call_operand.vmem [shape: bf16[32,128], index: 1, kind: input, shape index: {}]
  %s2 = inlined_call_operand.vmem [shape: f32[1,128], index: 2, kind: input, shape index: {}]
  %s3 = inlined_call_operand.vmem [shape: bf16[128,64], index: 3, kind: input, shape index: {}]
  %s4 = inlined_call_operand.vmem [shape: f32[1,64], index: 4, kind: input, shape index: {}]
  %s5 = inlined_call_operand.vmem [shape: bf16[1,64], index: 5, kind: input, shape index: {}]
  %s6 = inlined_call_operand.<no memory space> [shape: f32[1,1], index: 6, kind: input, shape index: {}]
  %s7 = inlined_call_operand.hbm [shape: f32[1,1024], index: 7, kind: output, shape index: {}]
  %s8 = sld [smem:[#allocation0]]
  $region38: #{_forward_jit.1} parent=0
    _
  %s10 = ssub.s32 1, %s8
  %s11 = scalar_select 0, %s10, %s8
  %v12 = vstv %s6
  %13 = vst [vmem:[#allocation2] sm:$0x1] %v12
  $region1: #{_forward_jit.1} parent=0
    #allocation3 [shape = 'u8[4096]{0}', space=vmem, size = 0x1000, scoped, tag = 'output window, operand 0, single buffered']
    #allocation4 [shape = 's32[1]{0}', space=sflag, size = 0x4, scoped, tag = 'scoped memory for _forward_jit.1']
    %14 = vsyncpa [#allocation4], 0
    // Predicated region
    $region2: #{_forward_jit.1} parent=1 // pred_check
      _
    $region3: #{_forward_jit.1} parent=1 // pred_check_branch
      %16 = sbr.rel (0) target = $region5
    $region4: #{_forward_jit.1} parent=1 // pred_region
      _
    $region5: #{_forward_jit.1} parent=1 // pred_fallthru
      _
    // Predicated region
    $region6: #{_forward_jit.1} parent=1 // pred_check
      _
    $region7: #{_forward_jit.1} parent=1 // pred_check_branch
      %18 = sbr.rel (0) target = $region9
    $region8: #{_forward_jit.1} parent=1 // pred_region
      _
    $region9: #{_forward_jit.1} parent=1 // pred_fallthru
      _
    // Predicated region
    $region10: #{_forward_jit.1} parent=1 // pred_check
      _
    $region11: #{_forward_jit.1} parent=1 // pred_check_branch
      %20 = sbr.rel (0) target = $region13
    $region12: #{_forward_jit.1} parent=1 // pred_region
      _
    $region13: #{_forward_jit.1} parent=1 // pred_fallthru
      _
    // Predicated region
    $region14: #{_forward_jit.1} parent=1 // pred_check
      _
    $region15: #{_forward_jit.1} parent=1 // pred_check_branch
      %22 = sbr.rel (0) target = $region17
    $region16: #{_forward_jit.1} parent=1 // pred_region
      _
    $region17: #{_forward_jit.1} parent=1 // pred_fallthru
      _
    // Predicated region
    $region18: #{_forward_jit.1} parent=1 // pred_check
      _
    $region19: #{_forward_jit.1} parent=1 // pred_check_branch
      %24 = sbr.rel (0) target = $region21
    $region20: #{_forward_jit.1} parent=1 // pred_region
      _
    $region21: #{_forward_jit.1} parent=1 // pred_fallthru
      _
    // Predicated region
    $region22: #{_forward_jit.1} parent=1 // pred_check
      _
    $region23: #{_forward_jit.1} parent=1 // pred_check_branch
      %26 = sbr.rel (0) target = $region25
    $region24: #{_forward_jit.1} parent=1 // pred_region
      _
    $region25: #{_forward_jit.1} parent=1 // pred_fallthru
      _
    // Predicated region
    $region26: #{_forward_jit.1} parent=1 // pred_check
      _
    $region27: #{_forward_jit.1} parent=1 // pred_check_branch
      %28 = sbr.rel (0) target = $region29
    $region28: #{_forward_jit.1} parent=1 // pred_region
      _
    $region29: #{_forward_jit.1} parent=1 // pred_fallthru
      _
    %v30 = vld [vmem:[%s0] sm:$0xff]
    %v31 = vld [vmem:[%s0 + $0x8] sm:$0xff]
    %v32 = vld [vmem:[%s0 + $0x10] sm:$0xff]
    %v33 = vld [vmem:[%s0 + $0x18] sm:$0xff]
    %v34 = vld [vmem:[%s0 + $0x20] sm:$0xff]
    %v35 = vld [vmem:[%s0 + $0x28] sm:$0xff]
    %v36 = vld [vmem:[%s0 + $0x30] sm:$0xff]
    %v37 = vld [vmem:[%s0 + $0x38] sm:$0xff]
    %v38 = vld [vmem:[%s0 + $0x40] sm:$0xff]
    %v39 = vld [vmem:[%s0 + $0x48] sm:$0xff]
    %v40 = vld [vmem:[%s0 + $0x50] sm:$0xff]
    %v41 = vld [vmem:[%s0 + $0x58] sm:$0xff]
    %v42 = vld [vmem:[%s0 + $0x60] sm:$0xff]
    %v43 = vld [vmem:[%s0 + $0x68] sm:$0xff]
    %v44 = vld [vmem:[%s0 + $0x70] sm:$0xff]
    %v45 = vld [vmem:[%s0 + $0x78] sm:$0xff]
    %v46 = vld [vmem:[%s0 + $0x80] sm:$0xff]
    %v47 = vld [vmem:[%s0 + $0x88] sm:$0xff]
    %v48 = vld [vmem:[%s0 + $0x90] sm:$0xff]
    %v49 = vld [vmem:[%s0 + $0x98] sm:$0xff]
    %v50 = vld [vmem:[%s0 + $0xa0] sm:$0xff]
    %v51 = vld [vmem:[%s0 + $0xa8] sm:$0xff]
    %v52 = vld [vmem:[%s0 + $0xb0] sm:$0xff]
    %v53 = vld [vmem:[%s0 + $0xb8] sm:$0xff]
    %v54 = vld [vmem:[%s0 + $0xc0] sm:$0xff]
    %v55 = vld [vmem:[%s0 + $0xc8] sm:$0xff]
    %v56 = vld [vmem:[%s0 + $0xd0] sm:$0xff]
    %v57 = vld [vmem:[%s0 + $0xd8] sm:$0xff]
    %v58 = vld [vmem:[%s0 + $0xe0] sm:$0xff]
    %v59 = vld [vmem:[%s0 + $0xe8] sm:$0xff]
    %v60 = vld [vmem:[%s0 + $0xf0] sm:$0xff]
    %v61 = vld [vmem:[%s0 + $0xf8] sm:$0xff]
    %v62 = vld [vmem:[%s0 + $0x100] sm:$0xff]
    %v63 = vld [vmem:[%s0 + $0x108] sm:$0xff]
    %v64 = vld [vmem:[%s0 + $0x110] sm:$0xff]
    %v65 = vld [vmem:[%s0 + $0x118] sm:$0xff]
    %v66 = vld [vmem:[%s0 + $0x120] sm:$0xff]
    %v67 = vld [vmem:[%s0 + $0x128] sm:$0xff]
    %v68 = vld [vmem:[%s0 + $0x130] sm:$0xff]
    %v69 = vld [vmem:[%s0 + $0x138] sm:$0xff]
    %v70 = vld [vmem:[%s0 + $0x140] sm:$0xff]
    %v71 = vld [vmem:[%s0 + $0x148] sm:$0xff]
    %v72 = vld [vmem:[%s0 + $0x150] sm:$0xff]
    %v73 = vld [vmem:[%s0 + $0x158] sm:$0xff]
    %v74 = vld [vmem:[%s0 + $0x160] sm:$0xff]
    %v75 = vld [vmem:[%s0 + $0x168] sm:$0xff]
    %v76 = vld [vmem:[%s0 + $0x170] sm:$0xff]
    %v77 = vld [vmem:[%s0 + $0x178] sm:$0xff]
    %v78 = vld [vmem:[%s0 + $0x180] sm:$0xff]
    %v79 = vld [vmem:[%s0 + $0x188] sm:$0xff]
    %v80 = vld [vmem:[%s0 + $0x190] sm:$0xff]
    %v81 = vld [vmem:[%s0 + $0x198] sm:$0xff]
    %v82 = vld [vmem:[%s0 + $0x1a0] sm:$0xff]
    %v83 = vld [vmem:[%s0 + $0x1a8] sm:$0xff]
    %v84 = vld [vmem:[%s0 + $0x1b0] sm:$0xff]
    %v85 = vld [vmem:[%s0 + $0x1b8] sm:$0xff]
    %v86 = vld [vmem:[%s0 + $0x1c0] sm:$0xff]
    %v87 = vld [vmem:[%s0 + $0x1c8] sm:$0xff]
    %v88 = vld [vmem:[%s0 + $0x1d0] sm:$0xff]
    %v89 = vld [vmem:[%s0 + $0x1d8] sm:$0xff]
    %v90 = vld [vmem:[%s0 + $0x1e0] sm:$0xff]
    %v91 = vld [vmem:[%s0 + $0x1e8] sm:$0xff]
    %v92 = vld [vmem:[%s0 + $0x1f0] sm:$0xff]
    %v93 = vld [vmem:[%s0 + $0x1f8] sm:$0xff]
    %v94 = vld [vmem:[%s0 + $0x200] sm:$0xff]
    %v95 = vld [vmem:[%s0 + $0x208] sm:$0xff]
    %v96 = vld [vmem:[%s0 + $0x210] sm:$0xff]
    %v97 = vld [vmem:[%s0 + $0x218] sm:$0xff]
    %v98 = vld [vmem:[%s0 + $0x220] sm:$0xff]
    %v99 = vld [vmem:[%s0 + $0x228] sm:$0xff]
    %v100 = vld [vmem:[%s0 + $0x230] sm:$0xff]
    %v101 = vld [vmem:[%s0 + $0x238] sm:$0xff]
    %v102 = vld [vmem:[%s0 + $0x240] sm:$0xff]
    %v103 = vld [vmem:[%s0 + $0x248] sm:$0xff]
    %v104 = vld [vmem:[%s0 + $0x250] sm:$0xff]
    %v105 = vld [vmem:[%s0 + $0x258] sm:$0xff]
    %v106 = vld [vmem:[%s0 + $0x260] sm:$0xff]
    %v107 = vld [vmem:[%s0 + $0x268] sm:$0xff]
    %v108 = vld [vmem:[%s0 + $0x270] sm:$0xff]
    %v109 = vld [vmem:[%s0 + $0x278] sm:$0xff]
    %v110 = vld [vmem:[%s0 + $0x280] sm:$0xff]
    %v111 = vld [vmem:[%s0 + $0x288] sm:$0xff]
    %v112 = vld [vmem:[%s0 + $0x290] sm:$0xff]
    %v113 = vld [vmem:[%s0 + $0x298] sm:$0xff]
    %v114 = vld [vmem:[%s0 + $0x2a0] sm:$0xff]
    %v115 = vld [vmem:[%s0 + $0x2a8] sm:$0xff]
    %v116 = vld [vmem:[%s0 + $0x2b0] sm:$0xff]
    %v117 = vld [vmem:[%s0 + $0x2b8] sm:$0xff]
    %v118 = vld [vmem:[%s0 + $0x2c0] sm:$0xff]
    %v119 = vld [vmem:[%s0 + $0x2c8] sm:$0xff]
    %v120 = vld [vmem:[%s0 + $0x2d0] sm:$0xff]
    %v121 = vld [vmem:[%s0 + $0x2d8] sm:$0xff]
    %v122 = vld [vmem:[%s0 + $0x2e0] sm:$0xff]
    %v123 = vld [vmem:[%s0 + $0x2e8] sm:$0xff]
    %v124 = vld [vmem:[%s0 + $0x2f0] sm:$0xff]
    %v125 = vld [vmem:[%s0 + $0x2f8] sm:$0xff]
    %v126 = vld [vmem:[%s0 + $0x300] sm:$0xff]
    %v127 = vld [vmem:[%s0 + $0x308] sm:$0xff]
    %v128 = vld [vmem:[%s0 + $0x310] sm:$0xff]
    %v129 = vld [vmem:[%s0 + $0x318] sm:$0xff]
    %v130 = vld [vmem:[%s0 + $0x320] sm:$0xff]
    %v131 = vld [vmem:[%s0 + $0x328] sm:$0xff]
    %v132 = vld [vmem:[%s0 + $0x330] sm:$0xff]
    %v133 = vld [vmem:[%s0 + $0x338] sm:$0xff]
    %v134 = vld [vmem:[%s0 + $0x340] sm:$0xff]
    %v135 = vld [vmem:[%s0 + $0x348] sm:$0xff]
    %v136 = vld [vmem:[%s0 + $0x350] sm:$0xff]
    %v137 = vld [vmem:[%s0 + $0x358] sm:$0xff]
    %v138 = vld [vmem:[%s0 + $0x360] sm:$0xff]
    %v139 = vld [vmem:[%s0 + $0x368] sm:$0xff]
    %v140 = vld [vmem:[%s0 + $0x370] sm:$0xff]
    %v141 = vld [vmem:[%s0 + $0x378] sm:$0xff]
    %v142 = vld [vmem:[%s0 + $0x380] sm:$0xff]
    %v143 = vld [vmem:[%s0 + $0x388] sm:$0xff]
    %v144 = vld [vmem:[%s0 + $0x390] sm:$0xff]
    %v145 = vld [vmem:[%s0 + $0x398] sm:$0xff]
    %v146 = vld [vmem:[%s0 + $0x3a0] sm:$0xff]
    %v147 = vld [vmem:[%s0 + $0x3a8] sm:$0xff]
    %v148 = vld [vmem:[%s0 + $0x3b0] sm:$0xff]
    %v149 = vld [vmem:[%s0 + $0x3b8] sm:$0xff]
    %v150 = vld [vmem:[%s0 + $0x3c0] sm:$0xff]
    %v151 = vld [vmem:[%s0 + $0x3c8] sm:$0xff]
    %v152 = vld [vmem:[%s0 + $0x3d0] sm:$0xff]
    %v153 = vld [vmem:[%s0 + $0x3d8] sm:$0xff]
    %v154 = vld [vmem:[%s0 + $0x3e0] sm:$0xff]
    %v155 = vld [vmem:[%s0 + $0x3e8] sm:$0xff]
    %v156 = vld [vmem:[%s0 + $0x3f0] sm:$0xff]
    %v157 = vld [vmem:[%s0 + $0x3f8] sm:$0xff]
    %v158 = vpack.c.bf16 %v31, %v30
    %v159 = vpack.c.bf16 %v33, %v32
    %v160 = vpack.c.bf16 %v35, %v34
    %v161 = vpack.c.bf16 %v37, %v36
    %v162 = vpack.c.bf16 %v39, %v38
    %v163 = vpack.c.bf16 %v41, %v40
    %v164 = vpack.c.bf16 %v43, %v42
    %v165 = vpack.c.bf16 %v45, %v44
    %v166 = vpack.c.bf16 %v47, %v46
    %v167 = vpack.c.bf16 %v49, %v48
    %v168 = vpack.c.bf16 %v51, %v50
    %v169 = vpack.c.bf16 %v53, %v52
    %v170 = vpack.c.bf16 %v55, %v54
    %v171 = vpack.c.bf16 %v57, %v56
    %v172 = vpack.c.bf16 %v59, %v58
    %v173 = vpack.c.bf16 %v61, %v60
    %v174 = vpack.c.bf16 %v63, %v62
    %v175 = vpack.c.bf16 %v65, %v64
    %v176 = vpack.c.bf16 %v67, %v66
    %v177 = vpack.c.bf16 %v69, %v68
    %v178 = vpack.c.bf16 %v71, %v70
    %v179 = vpack.c.bf16 %v73, %v72
    %v180 = vpack.c.bf16 %v75, %v74
    %v181 = vpack.c.bf16 %v77, %v76
    %v182 = vpack.c.bf16 %v79, %v78
    %v183 = vpack.c.bf16 %v81, %v80
    %v184 = vpack.c.bf16 %v83, %v82
    %v185 = vpack.c.bf16 %v85, %v84
    %v186 = vpack.c.bf16 %v87, %v86
    %v187 = vpack.c.bf16 %v89, %v88
    %v188 = vpack.c.bf16 %v91, %v90
    %v189 = vpack.c.bf16 %v93, %v92
    %v190 = vpack.c.bf16 %v95, %v94
    %v191 = vpack.c.bf16 %v97, %v96
    %v192 = vpack.c.bf16 %v99, %v98
    %v193 = vpack.c.bf16 %v101, %v100
    %v194 = vpack.c.bf16 %v103, %v102
    %v195 = vpack.c.bf16 %v105, %v104
    %v196 = vpack.c.bf16 %v107, %v106
    %v197 = vpack.c.bf16 %v109, %v108
    %v198 = vpack.c.bf16 %v111, %v110
    %v199 = vpack.c.bf16 %v113, %v112
    %v200 = vpack.c.bf16 %v115, %v114
    %v201 = vpack.c.bf16 %v117, %v116
    %v202 = vpack.c.bf16 %v119, %v118
    %v203 = vpack.c.bf16 %v121, %v120
    %v204 = vpack.c.bf16 %v123, %v122
    %v205 = vpack.c.bf16 %v125, %v124
    %v206 = vpack.c.bf16 %v127, %v126
    %v207 = vpack.c.bf16 %v129, %v128
    %v208 = vpack.c.bf16 %v131, %v130
    %v209 = vpack.c.bf16 %v133, %v132
    %v210 = vpack.c.bf16 %v135, %v134
    %v211 = vpack.c.bf16 %v137, %v136
    %v212 = vpack.c.bf16 %v139, %v138
    %v213 = vpack.c.bf16 %v141, %v140
    %v214 = vpack.c.bf16 %v143, %v142
    %v215 = vpack.c.bf16 %v145, %v144
    %v216 = vpack.c.bf16 %v147, %v146
    %v217 = vpack.c.bf16 %v149, %v148
    %v218 = vpack.c.bf16 %v151, %v150
    %v219 = vpack.c.bf16 %v153, %v152
    %v220 = vpack.c.bf16 %v155, %v154
    %v221 = vpack.c.bf16 %v157, %v156
    %v222 = vld [vmem:[%s1] sm:$0xf]
    %v223 = vld [vmem:[%s1 + $0x4] sm:$0xf]
    %v224 = vld [vmem:[%s1 + $0x8] sm:$0xf]
    %v225 = vld [vmem:[%s1 + $0xc] sm:$0xf]
    %v226 = vld [vmem:[%s2] sm:$0x1]
    %v228 = vlaneseq
    %v229 = vshrl.u32 %v228, 7
    %v230 = vsub.s32 0, %v229
    %v231 = vrot.slane %v226, %v230
    %v237 = vunpack.c.l.b16 %v222
    %v238 = vunpack.c.l.b16 %v223
    %v239 = vunpack.c.l.b16 %v224
    %v240 = vunpack.c.l.b16 %v225
    %v241 = vpack.c.b16 %v238, %v237
    %v242 = vpack.c.b16 %v240, %v239
    %vm245 = vcmask 261120
    %v247 = vsel %vm245, %v158, 0
    %v250 = vsel %vm245, %v159, 0
    %v253 = vsel %vm245, %v160, 0
    %v256 = vsel %vm245, %v161, 0
    %v259 = vsel %vm245, %v162, 0
    %v262 = vsel %vm245, %v163, 0
    %v265 = vsel %vm245, %v164, 0
    %v268 = vsel %vm245, %v165, 0
    %v271 = vsel %vm245, %v166, 0
    %v274 = vsel %vm245, %v167, 0
    %v277 = vsel %vm245, %v168, 0
    %v280 = vsel %vm245, %v169, 0
    %v283 = vsel %vm245, %v170, 0
    %v286 = vsel %vm245, %v171, 0
    %v289 = vsel %vm245, %v172, 0
    %v292 = vsel %vm245, %v173, 0
    %v295 = vsel %vm245, %v174, 0
    %v298 = vsel %vm245, %v175, 0
    %v301 = vsel %vm245, %v176, 0
    %v304 = vsel %vm245, %v177, 0
    %v307 = vsel %vm245, %v178, 0
    %v310 = vsel %vm245, %v179, 0
    %v313 = vsel %vm245, %v180, 0
    %v316 = vsel %vm245, %v181, 0
    %v319 = vsel %vm245, %v182, 0
    %v322 = vsel %vm245, %v183, 0
    %v325 = vsel %vm245, %v184, 0
    %v328 = vsel %vm245, %v185, 0
    %v331 = vsel %vm245, %v186, 0
    %v334 = vsel %vm245, %v187, 0
    %v337 = vsel %vm245, %v188, 0
    %v340 = vsel %vm245, %v189, 0
    %v343 = vsel %vm245, %v190, 0
    %v346 = vsel %vm245, %v191, 0
    %v349 = vsel %vm245, %v192, 0
    %v352 = vsel %vm245, %v193, 0
    %v355 = vsel %vm245, %v194, 0
    %v358 = vsel %vm245, %v195, 0
    %v361 = vsel %vm245, %v196, 0
    %v364 = vsel %vm245, %v197, 0
    %v367 = vsel %vm245, %v198, 0
    %v370 = vsel %vm245, %v199, 0
    %v373 = vsel %vm245, %v200, 0
    %v376 = vsel %vm245, %v201, 0
    %v379 = vsel %vm245, %v202, 0
    %v382 = vsel %vm245, %v203, 0
    %v385 = vsel %vm245, %v204, 0
    %v388 = vsel %vm245, %v205, 0
    %v391 = vsel %vm245, %v206, 0
    %v394 = vsel %vm245, %v207, 0
    %v397 = vsel %vm245, %v208, 0
    %v400 = vsel %vm245, %v209, 0
    %v403 = vsel %vm245, %v210, 0
    %v406 = vsel %vm245, %v211, 0
    %v409 = vsel %vm245, %v212, 0
    %v412 = vsel %vm245, %v213, 0
    %v415 = vsel %vm245, %v214, 0
    %v418 = vsel %vm245, %v215, 0
    %v421 = vsel %vm245, %v216, 0
    %v424 = vsel %vm245, %v217, 0
    %v427 = vsel %vm245, %v218, 0
    %v430 = vsel %vm245, %v219, 0
    %v433 = vsel %vm245, %v220, 0
    %v436 = vsel %vm245, %v221, 0
    %438 = vmatprep.subr.bf16.mxu0 0
    %439 = vmatpush1.bf16.msra.mxu0 %v241
    %440 = vmatprep.subr.bf16.mxu0 0
    %441 = vmatpush1.bf16.msra.mxu0 %v242
    %442 = vmatprep.subr.bf16.mxu0 0
    %443 = vmatpush1.bf16.msra.mxu0 0
    %444 = vmatprep.subr.bf16.mxu0 0
    %445 = vmatpush1.bf16.msra.mxu0 0
    %446 = vmatprep.subr.bf16.mxu0 0
    %447 = vmatpush1.bf16.msra.mxu0 0
    %448 = vmatprep.subr.bf16.mxu0 0
    %449 = vmatpush1.bf16.msra.mxu0 0
    %450 = vmatprep.subr.bf16.mxu0 0
    %451 = vmatpush1.bf16.msra.mxu0 0
    %452 = vmatprep.subr.bf16.mxu0 0
    %453 = vmatpush1.bf16.msra.mxu0 0
    %454 = vmatprep.subr.bf16.mxu0 0
    %455 = vmatpush1.bf16.msra.mxu0 0
    %456 = vmatprep.subr.bf16.mxu0 0
    %457 = vmatpush1.bf16.msra.mxu0 0
    %458 = vmatprep.subr.bf16.mxu0 0
    %459 = vmatpush1.bf16.msra.mxu0 0
    %460 = vmatprep.subr.bf16.mxu0 0
    %461 = vmatpush1.bf16.msra.mxu0 0
    %462 = vmatprep.subr.bf16.mxu0 0
    %463 = vmatpush1.bf16.msra.mxu0 0
    %464 = vmatprep.subr.bf16.mxu0 0
    %465 = vmatpush1.bf16.msra.mxu0 0
    %466 = vmatprep.subr.bf16.mxu0 0
    %467 = vmatpush1.bf16.msra.mxu0 0
    %468 = vmatprep.subr.bf16.mxu0 0
    %469 = vmatpush1.bf16.msra.mxu0 0
    %470 = vmatprep.mubr.bf16.mxu0 0
    %471 = vmatmul.mubr.bf16.gmra.mrb[0].mxu0 %v247
    %v472 = vpop.f32.mrb[0].mxu0
    %v473 = vadd.f32 %v231, %v472
    %v474 = vpop.f32.mrb[0].mxu0
    %v475 = vpop.f32.mrb[0].mxu0
    %v476 = vadd.f32 %v231, %v475
    %v477 = vpop.f32.mrb[0].mxu0
    %478 = vmatprep.mubr.bf16.mxu0 0
    %479 = vmatmul.mubr.bf16.gmra.mrb[0].mxu0 %v250
    %v480 = vpop.f32.mrb[0].mxu0
    %v481 = vadd.f32 %v231, %v480
    %v482 = vpop.f32.mrb[0].mxu0
    %v483 = vpop.f32.mrb[0].mxu0
    %v484 = vadd.f32 %v231, %v483
    %v485 = vpop.f32.mrb[0].mxu0
    %486 = vmatprep.mubr.bf16.mxu0 0
    %487 = vmatmul.mubr.bf16.gmra.mrb[0].mxu0 %v253
    %v488 = vpop.f32.mrb[0].mxu0
    %v489 = vadd.f32 %v231, %v488
    %v490 = vpop.f32.mrb[0].mxu0
    %v491 = vpop.f32.mrb[0].mxu0
    %v492 = vadd.f32 %v231, %v491
    %v493 = vpop.f32.mrb[0].mxu0
    %494 = vmatprep.mubr.bf16.mxu0 0
    %495 = vmatmul.mubr.bf16.gmra.mrb[0].mxu0 %v256
    %v496 = vpop.f32.mrb[0].mxu0
    %v497 = vadd.f32 %v231, %v496
    %v498 = vpop.f32.mrb[0].mxu0
    %v499 = vpop.f32.mrb[0].mxu0
    %v500 = vadd.f32 %v231, %v499
    %v501 = vpop.f32.mrb[0].mxu0
    %502 = vmatprep.mubr.bf16.mxu0 0
    %503 = vmatmul.mubr.bf16.gmra.mrb[0].mxu0 %v259
    %v504 = vpop.f32.mrb[0].mxu0
    %v505 = vadd.f32 %v231, %v504
    %v506 = vpop.f32.mrb[0].mxu0
    %v507 = vpop.f32.mrb[0].mxu0
    %v508 = vadd.f32 %v231, %v507
    %v509 = vpop.f32.mrb[0].mxu0
    %510 = vmatprep.mubr.bf16.mxu0 0
    %511 = vmatmul.mubr.bf16.gmra.mrb[0].mxu0 %v262
    %v512 = vpop.f32.mrb[0].mxu0
    %v513 = vadd.f32 %v231, %v512
    %v514 = vpop.f32.mrb[0].mxu0
    %v515 = vpop.f32.mrb[0].mxu0
    %v516 = vadd.f32 %v231, %v515
    %v517 = vpop.f32.mrb[0].mxu0
    %518 = vmatprep.mubr.bf16.mxu0 0
    %519 = vmatmul.mubr.bf16.gmra.mrb[0].mxu0 %v265
    %v520 = vpop.f32.mrb[0].mxu0
    %v521 = vadd.f32 %v231, %v520
    %v522 = vpop.f32.mrb[0].mxu0
    %v523 = vpop.f32.mrb[0].mxu0
    %v524 = vadd.f32 %v231, %v523
    %v525 = vpop.f32.mrb[0].mxu0
    %526 = vmatprep.mubr.bf16.mxu0 0
    %527 = vmatmul.mubr.bf16.gmra.mrb[0].mxu0 %v268
    %v528 = vpop.f32.mrb[0].mxu0
    %v529 = vadd.f32 %v231, %v528
    %v530 = vpop.f32.mrb[0].mxu0
    %v531 = vpop.f32.mrb[0].mxu0
    %v532 = vadd.f32 %v231, %v531
    %v533 = vpop.f32.mrb[0].mxu0
    %534 = vmatprep.mubr.bf16.mxu0 0
    %535 = vmatmul.mubr.bf16.gmra.mrb[0].mxu0 %v271
    %v536 = vpop.f32.mrb[0].mxu0
    %v537 = vadd.f32 %v231, %v536
    %v538 = vpop.f32.mrb[0].mxu0
    %v539 = vpop.f32.mrb[0].mxu0
    %v540 = vadd.f32 %v231, %v539
    %v541 = vpop.f32.mrb[0].mxu0
    %542 = vmatprep.mubr.bf16.mxu0 0
    %543 = vmatmul.mubr.bf16.gmra.mrb[0].mxu0 %v274
    %v544 = vpop.f32.mrb[0].mxu0
    %v545 = vadd.f32 %v231, %v544
    %v546 = vpop.f32.mrb[0].mxu0
    %v547 = vpop.f32.mrb[0].mxu0
    %v548 = vadd.f32 %v231, %v547
    %v549 = vpop.f32.mrb[0].mxu0
    %550 = vmatprep.mubr.bf16.mxu0 0
    %551 = vmatmul.mubr.bf16.gmra.mrb[0].mxu0 %v277
    %v552 = vpop.f32.mrb[0].mxu0
    %v553 = vadd.f32 %v231, %v552
    %v554 = vpop.f32.mrb[0].mxu0
    %v555 = vpop.f32.mrb[0].mxu0
    %v556 = vadd.f32 %v231, %v555
    %v557 = vpop.f32.mrb[0].mxu0
    %558 = vmatprep.mubr.bf16.mxu0 0
    %559 = vmatmul.mubr.bf16.gmra.mrb[0].mxu0 %v280
    %v560 = vpop.f32.mrb[0].mxu0
    %v561 = vadd.f32 %v231, %v560
    %v562 = vpop.f32.mrb[0].mxu0
    %v563 = vpop.f32.mrb[0].mxu0
    %v564 = vadd.f32 %v231, %v563
    %v565 = vpop.f32.mrb[0].mxu0
    %566 = vmatprep.mubr.bf16.mxu0 0
    %567 = vmatmul.mubr.bf16.gmra.mrb[0].mxu0 %v283
    %v568 = vpop.f32.mrb[0].mxu0
    %v569 = vadd.f32 %v231, %v568
    %v570 = vpop.f32.mrb[0].mxu0
    %v571 = vpop.f32.mrb[0].mxu0
    %v572 = vadd.f32 %v231, %v571
    %v573 = vpop.f32.mrb[0].mxu0
    %574 = vmatprep.mubr.bf16.mxu0 0
    %575 = vmatmul.mubr.bf16.gmra.mrb[0].mxu0 %v286
    %v576 = vpop.f32.mrb[0].mxu0
    %v577 = vadd.f32 %v231, %v576
    %v578 = vpop.f32.mrb[0].mxu0
    %v579 = vpop.f32.mrb[0].mxu0
    %v580 = vadd.f32 %v231, %v579
    %v581 = vpop.f32.mrb[0].mxu0
    %582 = vmatprep.mubr.bf16.mxu0 0
    %583 = vmatmul.mubr.bf16.gmra.mrb[0].mxu0 %v289
    %v584 = vpop.f32.mrb[0].mxu0
    %v585 = vadd.f32 %v231, %v584
    %v586 = vpop.f32.mrb[0].mxu0
    %v587 = vpop.f32.mrb[0].mxu0
    %v588 = vadd.f32 %v231, %v587
    %v589 = vpop.f32.mrb[0].mxu0
    %590 = vmatprep.mubr.bf16.mxu0 0
    %591 = vmatmul.mubr.bf16.gmra.mrb[0].mxu0 %v292
    %v592 = vpop.f32.mrb[0].mxu0
    %v593 = vadd.f32 %v231, %v592
    %v594 = vpop.f32.mrb[0].mxu0
    %v595 = vpop.f32.mrb[0].mxu0
    %v596 = vadd.f32 %v231, %v595
    %v597 = vpop.f32.mrb[0].mxu0
    %598 = vmatprep.mubr.bf16.mxu0 0
    %599 = vmatmul.mubr.bf16.gmra.mrb[0].mxu0 %v295
    %v600 = vpop.f32.mrb[0].mxu0
    %v601 = vadd.f32 %v231, %v600
    %v602 = vpop.f32.mrb[0].mxu0
    %v603 = vpop.f32.mrb[0].mxu0
    %v604 = vadd.f32 %v231, %v603
    %v605 = vpop.f32.mrb[0].mxu0
    %606 = vmatprep.mubr.bf16.mxu0 0
    %607 = vmatmul.mubr.bf16.gmra.mrb[0].mxu0 %v298
    %v608 = vpop.f32.mrb[0].mxu0
    %v609 = vadd.f32 %v231, %v608
    %v610 = vpop.f32.mrb[0].mxu0
    %v611 = vpop.f32.mrb[0].mxu0
    %v612 = vadd.f32 %v231, %v611
    %v613 = vpop.f32.mrb[0].mxu0
    %614 = vmatprep.mubr.bf16.mxu0 0
    %615 = vmatmul.mubr.bf16.gmra.mrb[0].mxu0 %v301
    %v616 = vpop.f32.mrb[0].mxu0
    %v617 = vadd.f32 %v231, %v616
    %v618 = vpop.f32.mrb[0].mxu0
    %v619 = vpop.f32.mrb[0].mxu0
    %v620 = vadd.f32 %v231, %v619
    %v621 = vpop.f32.mrb[0].mxu0
    %622 = vmatprep.mubr.bf16.mxu0 0
    %623 = vmatmul.mubr.bf16.gmra.mrb[0].mxu0 %v304
    %v624 = vpop.f32.mrb[0].mxu0
    %v625 = vadd.f32 %v231, %v624
    %v626 = vpop.f32.mrb[0].mxu0
    %v627 = vpop.f32.mrb[0].mxu0
    %v628 = vadd.f32 %v231, %v627
    %v629 = vpop.f32.mrb[0].mxu0
    %630 = vmatprep.mubr.bf16.mxu0 0
    %631 = vmatmul.mubr.bf16.gmra.mrb[0].mxu0 %v307
    %v632 = vpop.f32.mrb[0].mxu0
    %v633 = vadd.f32 %v231, %v632
    %v634 = vpop.f32.mrb[0].mxu0
    %v635 = vpop.f32.mrb[0].mxu0
    %v636 = vadd.f32 %v231, %v635
    %v637 = vpop.f32.mrb[0].mxu0
    %638 = vmatprep.mubr.bf16.mxu0 0
    %639 = vmatmul.mubr.bf16.gmra.mrb[0].mxu0 %v310
    %v640 = vpop.f32.mrb[0].mxu0
    %v641 = vadd.f32 %v231, %v640
    %v642 = vpop.f32.mrb[0].mxu0
    %v643 = vpop.f32.mrb[0].mxu0
    %v644 = vadd.f32 %v231, %v643
    %v645 = vpop.f32.mrb[0].mxu0
    %646 = vmatprep.mubr.bf16.mxu0 0
    %647 = vmatmul.mubr.bf16.gmra.mrb[0].mxu0 %v313
    %v648 = vpop.f32.mrb[0].mxu0
    %v649 = vadd.f32 %v231, %v648
    %v650 = vpop.f32.mrb[0].mxu0
    %v651 = vpop.f32.mrb[0].mxu0
    %v652 = vadd.f32 %v231, %v651
    %v653 = vpop.f32.mrb[0].mxu0
    %654 = vmatprep.mubr.bf16.mxu0 0
    %655 = vmatmul.mubr.bf16.gmra.mrb[0].mxu0 %v316
    %v656 = vpop.f32.mrb[0].mxu0
    %v657 = vadd.f32 %v231, %v656
    %v658 = vpop.f32.mrb[0].mxu0
    %v659 = vpop.f32.mrb[0].mxu0
    %v660 = vadd.f32 %v231, %v659
    %v661 = vpop.f32.mrb[0].mxu0
    %662 = vmatprep.mubr.bf16.mxu0 0
    %663 = vmatmul.mubr.bf16.gmra.mrb[0].mxu0 %v319
    %v664 = vpop.f32.mrb[0].mxu0
    %v665 = vadd.f32 %v231, %v664
    %v666 = vpop.f32.mrb[0].mxu0
    %v667 = vpop.f32.mrb[0].mxu0
    %v668 = vadd.f32 %v231, %v667
    %v669 = vpop.f32.mrb[0].mxu0
    %670 = vmatprep.mubr.bf16.mxu0 0
    %671 = vmatmul.mubr.bf16.gmra.mrb[0].mxu0 %v322
    %v672 = vpop.f32.mrb[0].mxu0
    %v673 = vadd.f32 %v231, %v672
    %v674 = vpop.f32.mrb[0].mxu0
    %v675 = vpop.f32.mrb[0].mxu0
    %v676 = vadd.f32 %v231, %v675
    %v677 = vpop.f32.mrb[0].mxu0
    %678 = vmatprep.mubr.bf16.mxu0 0
    %679 = vmatmul.mubr.bf16.gmra.mrb[0].mxu0 %v325
    %v680 = vpop.f32.mrb[0].mxu0
    %v681 = vadd.f32 %v231, %v680
    %v682 = vpop.f32.mrb[0].mxu0
    %v683 = vpop.f32.mrb[0].mxu0
    %v684 = vadd.f32 %v231, %v683
    %v685 = vpop.f32.mrb[0].mxu0
    %686 = vmatprep.mubr.bf16.mxu0 0
    %687 = vmatmul.mubr.bf16.gmra.mrb[0].mxu0 %v328
    %v688 = vpop.f32.mrb[0].mxu0
    %v689 = vadd.f32 %v231, %v688
    %v690 = vpop.f32.mrb[0].mxu0
    %v691 = vpop.f32.mrb[0].mxu0
    %v692 = vadd.f32 %v231, %v691
    %v693 = vpop.f32.mrb[0].mxu0
    %694 = vmatprep.mubr.bf16.mxu0 0
    %695 = vmatmul.mubr.bf16.gmra.mrb[0].mxu0 %v331
    %v696 = vpop.f32.mrb[0].mxu0
    %v697 = vadd.f32 %v231, %v696
    %v698 = vpop.f32.mrb[0].mxu0
    %v699 = vpop.f32.mrb[0].mxu0
    %v700 = vadd.f32 %v231, %v699
    %v701 = vpop.f32.mrb[0].mxu0
    %702 = vmatprep.mubr.bf16.mxu0 0
    %703 = vmatmul.mubr.bf16.gmra.mrb[0].mxu0 %v334
    %v704 = vpop.f32.mrb[0].mxu0
    %v705 = vadd.f32 %v231, %v704
    %v706 = vpop.f32.mrb[0].mxu0
    %v707 = vpop.f32.mrb[0].mxu0
    %v708 = vadd.f32 %v231, %v707
    %v709 = vpop.f32.mrb[0].mxu0
    %710 = vmatprep.mubr.bf16.mxu0 0
    %711 = vmatmul.mubr.bf16.gmra.mrb[0].mxu0 %v337
    %v712 = vpop.f32.mrb[0].mxu0
    %v713 = vadd.f32 %v231, %v712
    %v714 = vpop.f32.mrb[0].mxu0
    %v715 = vpop.f32.mrb[0].mxu0
    %v716 = vadd.f32 %v231, %v715
    %v717 = vpop.f32.mrb[0].mxu0
    %718 = vmatprep.mubr.bf16.mxu0 0
    %719 = vmatmul.mubr.bf16.gmra.mrb[0].mxu0 %v340
    %v720 = vpop.f32.mrb[0].mxu0
    %v721 = vadd.f32 %v231, %v720
    %v722 = vpop.f32.mrb[0].mxu0
    %v723 = vpop.f32.mrb[0].mxu0
    %v724 = vadd.f32 %v231, %v723
    %v725 = vpop.f32.mrb[0].mxu0
    %726 = vmatprep.mubr.bf16.mxu0 0
    %727 = vmatmul.mubr.bf16.gmra.mrb[0].mxu0 %v343
    %v728 = vpop.f32.mrb[0].mxu0
    %v729 = vadd.f32 %v231, %v728
    %v730 = vpop.f32.mrb[0].mxu0
    %v731 = vpop.f32.mrb[0].mxu0
    %v732 = vadd.f32 %v231, %v731
    %v733 = vpop.f32.mrb[0].mxu0
    %734 = vmatprep.mubr.bf16.mxu0 0
    %735 = vmatmul.mubr.bf16.gmra.mrb[0].mxu0 %v346
    %v736 = vpop.f32.mrb[0].mxu0
    %v737 = vadd.f32 %v231, %v736
    %v738 = vpop.f32.mrb[0].mxu0
    %v739 = vpop.f32.mrb[0].mxu0
    %v740 = vadd.f32 %v231, %v739
    %v741 = vpop.f32.mrb[0].mxu0
    %742 = vmatprep.mubr.bf16.mxu0 0
    %743 = vmatmul.mubr.bf16.gmra.mrb[0].mxu0 %v349
    %v744 = vpop.f32.mrb[0].mxu0
    %v745 = vadd.f32 %v231, %v744
    %v746 = vpop.f32.mrb[0].mxu0
    %v747 = vpop.f32.mrb[0].mxu0
    %v748 = vadd.f32 %v231, %v747
    %v749 = vpop.f32.mrb[0].mxu0
    %750 = vmatprep.mubr.bf16.mxu0 0
    %751 = vmatmul.mubr.bf16.gmra.mrb[0].mxu0 %v352
    %v752 = vpop.f32.mrb[0].mxu0
    %v753 = vadd.f32 %v231, %v752
    %v754 = vpop.f32.mrb[0].mxu0
    %v755 = vpop.f32.mrb[0].mxu0
    %v756 = vadd.f32 %v231, %v755
    %v757 = vpop.f32.mrb[0].mxu0
    %758 = vmatprep.mubr.bf16.mxu0 0
    %759 = vmatmul.mubr.bf16.gmra.mrb[0].mxu0 %v355
    %v760 = vpop.f32.mrb[0].mxu0
    %v761 = vadd.f32 %v231, %v760
    %v762 = vpop.f32.mrb[0].mxu0
    %v763 = vpop.f32.mrb[0].mxu0
    %v764 = vadd.f32 %v231, %v763
    %v765 = vpop.f32.mrb[0].mxu0
    %766 = vmatprep.mubr.bf16.mxu0 0
    %767 = vmatmul.mubr.bf16.gmra.mrb[0].mxu0 %v358
    %v768 = vpop.f32.mrb[0].mxu0
    %v769 = vadd.f32 %v231, %v768
    %v770 = vpop.f32.mrb[0].mxu0
    %v771 = vpop.f32.mrb[0].mxu0
    %v772 = vadd.f32 %v231, %v771
    %v773 = vpop.f32.mrb[0].mxu0
    %774 = vmatprep.mubr.bf16.mxu0 0
    %775 = vmatmul.mubr.bf16.gmra.mrb[0].mxu0 %v361
    %v776 = vpop.f32.mrb[0].mxu0
    %v777 = vadd.f32 %v231, %v776
    %v778 = vpop.f32.mrb[0].mxu0
    %v779 = vpop.f32.mrb[0].mxu0
    %v780 = vadd.f32 %v231, %v779
    %v781 = vpop.f32.mrb[0].mxu0
    %782 = vmatprep.mubr.bf16.mxu0 0
    %783 = vmatmul.mubr.bf16.gmra.mrb[0].mxu0 %v364
    %v784 = vpop.f32.mrb[0].mxu0
    %v785 = vadd.f32 %v231, %v784
    %v786 = vpop.f32.mrb[0].mxu0
    %v787 = vpop.f32.mrb[0].mxu0
    %v788 = vadd.f32 %v231, %v787
    %v789 = vpop.f32.mrb[0].mxu0
    %790 = vmatprep.mubr.bf16.mxu0 0
    %791 = vmatmul.mubr.bf16.gmra.mrb[0].mxu0 %v367
    %v792 = vpop.f32.mrb[0].mxu0
    %v793 = vadd.f32 %v231, %v792
    %v794 = vpop.f32.mrb[0].mxu0
    %v795 = vpop.f32.mrb[0].mxu0
    %v796 = vadd.f32 %v231, %v795
    %v797 = vpop.f32.mrb[0].mxu0
    %798 = vmatprep.mubr.bf16.mxu0 0
    %799 = vmatmul.mubr.bf16.gmra.mrb[0].mxu0 %v370
    %v800 = vpop.f32.mrb[0].mxu0
    %v801 = vadd.f32 %v231, %v800
    %v802 = vpop.f32.mrb[0].mxu0
    %v803 = vpop.f32.mrb[0].mxu0
    %v804 = vadd.f32 %v231, %v803
    %v805 = vpop.f32.mrb[0].mxu0
    %806 = vmatprep.mubr.bf16.mxu0 0
    %807 = vmatmul.mubr.bf16.gmra.mrb[0].mxu0 %v373
    %v808 = vpop.f32.mrb[0].mxu0
    %v809 = vadd.f32 %v231, %v808
    %v810 = vpop.f32.mrb[0].mxu0
    %v811 = vpop.f32.mrb[0].mxu0
    %v812 = vadd.f32 %v231, %v811
    %v813 = vpop.f32.mrb[0].mxu0
    %814 = vmatprep.mubr.bf16.mxu0 0
    %815 = vmatmul.mubr.bf16.gmra.mrb[0].mxu0 %v376
    %v816 = vpop.f32.mrb[0].mxu0
    %v817 = vadd.f32 %v231, %v816
    %v818 = vpop.f32.mrb[0].mxu0
    %v819 = vpop.f32.mrb[0].mxu0
    %v820 = vadd.f32 %v231, %v819
    %v821 = vpop.f32.mrb[0].mxu0
    %822 = vmatprep.mubr.bf16.mxu0 0
    %823 = vmatmul.mubr.bf16.gmra.mrb[0].mxu0 %v379
    %v824 = vpop.f32.mrb[0].mxu0
    %v825 = vadd.f32 %v231, %v824
    %v826 = vpop.f32.mrb[0].mxu0
    %v827 = vpop.f32.mrb[0].mxu0
    %v828 = vadd.f32 %v231, %v827
    %v829 = vpop.f32.mrb[0].mxu0
    %830 = vmatprep.mubr.bf16.mxu0 0
    %831 = vmatmul.mubr.bf16.gmra.mrb[0].mxu0 %v382
    %v832 = vpop.f32.mrb[0].mxu0
    %v833 = vadd.f32 %v231, %v832
    %v834 = vpop.f32.mrb[0].mxu0
    %v835 = vpop.f32.mrb[0].mxu0
    %v836 = vadd.f32 %v231, %v835
    %v837 = vpop.f32.mrb[0].mxu0
    %838 = vmatprep.mubr.bf16.mxu0 0
    %839 = vmatmul.mubr.bf16.gmra.mrb[0].mxu0 %v385
    %v840 = vpop.f32.mrb[0].mxu0
    %v841 = vadd.f32 %v231, %v840
    %v842 = vpop.f32.mrb[0].mxu0
    %v843 = vpop.f32.mrb[0].mxu0
    %v844 = vadd.f32 %v231, %v843
    %v845 = vpop.f32.mrb[0].mxu0
    %846 = vmatprep.mubr.bf16.mxu0 0
    %847 = vmatmul.mubr.bf16.gmra.mrb[0].mxu0 %v388
    %v848 = vpop.f32.mrb[0].mxu0
    %v849 = vadd.f32 %v231, %v848
    %v850 = vpop.f32.mrb[0].mxu0
    %v851 = vpop.f32.mrb[0].mxu0
    %v852 = vadd.f32 %v231, %v851
    %v853 = vpop.f32.mrb[0].mxu0
    %854 = vmatprep.mubr.bf16.mxu0 0
    %855 = vmatmul.mubr.bf16.gmra.mrb[0].mxu0 %v391
    %v856 = vpop.f32.mrb[0].mxu0
    %v857 = vadd.f32 %v231, %v856
    %v858 = vpop.f32.mrb[0].mxu0
    %v859 = vpop.f32.mrb[0].mxu0
    %v860 = vadd.f32 %v231, %v859
    %v861 = vpop.f32.mrb[0].mxu0
    %862 = vmatprep.mubr.bf16.mxu0 0
    %863 = vmatmul.mubr.bf16.gmra.mrb[0].mxu0 %v394
    %v864 = vpop.f32.mrb[0].mxu0
    %v865 = vadd.f32 %v231, %v864
    %v866 = vpop.f32.mrb[0].mxu0
    %v867 = vpop.f32.mrb[0].mxu0
    %v868 = vadd.f32 %v231, %v867
    %v869 = vpop.f32.mrb[0].mxu0
    %870 = vmatprep.mubr.bf16.mxu0 0
    %871 = vmatmul.mubr.bf16.gmra.mrb[0].mxu0 %v397
    %v872 = vpop.f32.mrb[0].mxu0
    %v873 = vadd.f32 %v231, %v872
    %v874 = vpop.f32.mrb[0].mxu0
    %v875 = vpop.f32.mrb[0].mxu0
    %v876 = vadd.f32 %v231, %v875
    %v877 = vpop.f32.mrb[0].mxu0
    %878 = vmatprep.mubr.bf16.mxu0 0
    %879 = vmatmul.mubr.bf16.gmra.mrb[0].mxu0 %v400
    %v880 = vpop.f32.mrb[0].mxu0
    %v881 = vadd.f32 %v231, %v880
    %v882 = vpop.f32.mrb[0].mxu0
    %v883 = vpop.f32.mrb[0].mxu0
    %v884 = vadd.f32 %v231, %v883
    %v885 = vpop.f32.mrb[0].mxu0
    %886 = vmatprep.mubr.bf16.mxu0 0
    %887 = vmatmul.mubr.bf16.gmra.mrb[0].mxu0 %v403
    %v888 = vpop.f32.mrb[0].mxu0
    %v889 = vadd.f32 %v231, %v888
    %v890 = vpop.f32.mrb[0].mxu0
    %v891 = vpop.f32.mrb[0].mxu0
    %v892 = vadd.f32 %v231, %v891
    %v893 = vpop.f32.mrb[0].mxu0
    %894 = vmatprep.mubr.bf16.mxu0 0
    %895 = vmatmul.mubr.bf16.gmra.mrb[0].mxu0 %v406
    %v896 = vpop.f32.mrb[0].mxu0
    %v897 = vadd.f32 %v231, %v896
    %v898 = vpop.f32.mrb[0].mxu0
    %v899 = vpop.f32.mrb[0].mxu0
    %v900 = vadd.f32 %v231, %v899
    %v901 = vpop.f32.mrb[0].mxu0
    %902 = vmatprep.mubr.bf16.mxu0 0
    %903 = vmatmul.mubr.bf16.gmra.mrb[0].mxu0 %v409
    %v904 = vpop.f32.mrb[0].mxu0
    %v905 = vadd.f32 %v231, %v904
    %v906 = vpop.f32.mrb[0].mxu0
    %v907 = vpop.f32.mrb[0].mxu0
    %v908 = vadd.f32 %v231, %v907
    %v909 = vpop.f32.mrb[0].mxu0
    %910 = vmatprep.mubr.bf16.mxu0 0
    %911 = vmatmul.mubr.bf16.gmra.mrb[0].mxu0 %v412
    %v912 = vpop.f32.mrb[0].mxu0
    %v913 = vadd.f32 %v231, %v912
    %v914 = vpop.f32.mrb[0].mxu0
    %v915 = vpop.f32.mrb[0].mxu0
    %v916 = vadd.f32 %v231, %v915
    %v917 = vpop.f32.mrb[0].mxu0
    %918 = vmatprep.mubr.bf16.mxu0 0
    %919 = vmatmul.mubr.bf16.gmra.mrb[0].mxu0 %v415
    %v920 = vpop.f32.mrb[0].mxu0
    %v921 = vadd.f32 %v231, %v920
    %v922 = vpop.f32.mrb[0].mxu0
    %v923 = vpop.f32.mrb[0].mxu0
    %v924 = vadd.f32 %v231, %v923
    %v925 = vpop.f32.mrb[0].mxu0
    %926 = vmatprep.mubr.bf16.mxu0 0
    %927 = vmatmul.mubr.bf16.gmra.mrb[0].mxu0 %v418
    %v928 = vpop.f32.mrb[0].mxu0
    %v929 = vadd.f32 %v231, %v928
    %v930 = vpop.f32.mrb[0].mxu0
    %v931 = vpop.f32.mrb[0].mxu0
    %v932 = vadd.f32 %v231, %v931
    %v933 = vpop.f32.mrb[0].mxu0
    %934 = vmatprep.mubr.bf16.mxu0 0
    %935 = vmatmul.mubr.bf16.gmra.mrb[0].mxu0 %v421
    %v936 = vpop.f32.mrb[0].mxu0
    %v937 = vadd.f32 %v231, %v936
    %v938 = vpop.f32.mrb[0].mxu0
    %v939 = vpop.f32.mrb[0].mxu0
    %v940 = vadd.f32 %v231, %v939
    %v941 = vpop.f32.mrb[0].mxu0
    %942 = vmatprep.mubr.bf16.mxu0 0
    %943 = vmatmul.mubr.bf16.gmra.mrb[0].mxu0 %v424
    %v944 = vpop.f32.mrb[0].mxu0
    %v945 = vadd.f32 %v231, %v944
    %v946 = vpop.f32.mrb[0].mxu0
    %v947 = vpop.f32.mrb[0].mxu0
    %v948 = vadd.f32 %v231, %v947
    %v949 = vpop.f32.mrb[0].mxu0
    %950 = vmatprep.mubr.bf16.mxu0 0
    %951 = vmatmul.mubr.bf16.gmra.mrb[0].mxu0 %v427
    %v952 = vpop.f32.mrb[0].mxu0
    %v953 = vadd.f32 %v231, %v952
    %v954 = vpop.f32.mrb[0].mxu0
    %v955 = vpop.f32.mrb[0].mxu0
    %v956 = vadd.f32 %v231, %v955
    %v957 = vpop.f32.mrb[0].mxu0
    %958 = vmatprep.mubr.bf16.mxu0 0
    %959 = vmatmul.mubr.bf16.gmra.mrb[0].mxu0 %v430
    %v960 = vpop.f32.mrb[0].mxu0
    %v961 = vadd.f32 %v231, %v960
    %v962 = vpop.f32.mrb[0].mxu0
    %v963 = vpop.f32.mrb[0].mxu0
    %v964 = vadd.f32 %v231, %v963
    %v965 = vpop.f32.mrb[0].mxu0
    %966 = vmatprep.mubr.bf16.mxu0 0
    %967 = vmatmul.mubr.bf16.gmra.mrb[0].mxu0 %v433
    %v968 = vpop.f32.mrb[0].mxu0
    %v969 = vadd.f32 %v231, %v968
    %v970 = vpop.f32.mrb[0].mxu0
    %v971 = vpop.f32.mrb[0].mxu0
    %v972 = vadd.f32 %v231, %v971
    %v973 = vpop.f32.mrb[0].mxu0
    %974 = vmatprep.mubr.bf16.mxu0 0
    %975 = vmatmul.mubr.bf16.gmra.mrb[0].mxu0 %v436
    %v976 = vpop.f32.mrb[0].mxu0
    %v977 = vadd.f32 %v231, %v976
    %v978 = vpop.f32.mrb[0].mxu0
    %v979 = vpop.f32.mrb[0].mxu0
    %v980 = vadd.f32 %v231, %v979
    %v981 = vpop.f32.mrb[0].mxu0
    %982 = vdwg.mxu0
    %v983 = vmax.f32 %v473, 0.0
    %v984 = vmax.f32 %v476, 0.0
    %v985 = vmax.f32 %v481, 0.0
    %v986 = vmax.f32 %v484, 0.0
    %v987 = vmax.f32 %v489, 0.0
    %v988 = vmax.f32 %v492, 0.0
    %v989 = vmax.f32 %v497, 0.0
    %v990 = vmax.f32 %v500, 0.0
    %v991 = vmax.f32 %v505, 0.0
    %v992 = vmax.f32 %v508, 0.0
    %v993 = vmax.f32 %v513, 0.0
    %v994 = vmax.f32 %v516, 0.0
    %v995 = vmax.f32 %v521, 0.0
    %v996 = vmax.f32 %v524, 0.0
    %v997 = vmax.f32 %v529, 0.0
    %v998 = vmax.f32 %v532, 0.0
    %v999 = vmax.f32 %v537, 0.0
    %v1000 = vmax.f32 %v540, 0.0
    %v1001 = vmax.f32 %v545, 0.0
    %v1002 = vmax.f32 %v548, 0.0
    %v1003 = vmax.f32 %v553, 0.0
    %v1004 = vmax.f32 %v556, 0.0
    %v1005 = vmax.f32 %v561, 0.0
    %v1006 = vmax.f32 %v564, 0.0
    %v1007 = vmax.f32 %v569, 0.0
    %v1008 = vmax.f32 %v572, 0.0
    %v1009 = vmax.f32 %v577, 0.0
    %v1010 = vmax.f32 %v580, 0.0
    %v1011 = vmax.f32 %v585, 0.0
    %v1012 = vmax.f32 %v588, 0.0
    %v1013 = vmax.f32 %v593, 0.0
    %v1014 = vmax.f32 %v596, 0.0
    %v1015 = vmax.f32 %v601, 0.0
    %v1016 = vmax.f32 %v604, 0.0
    %v1017 = vmax.f32 %v609, 0.0
    %v1018 = vmax.f32 %v612, 0.0
    %v1019 = vmax.f32 %v617, 0.0
    %v1020 = vmax.f32 %v620, 0.0
    %v1021 = vmax.f32 %v625, 0.0
    %v1022 = vmax.f32 %v628, 0.0
    %v1023 = vmax.f32 %v633, 0.0
    %v1024 = vmax.f32 %v636, 0.0
    %v1025 = vmax.f32 %v641, 0.0
    %v1026 = vmax.f32 %v644, 0.0
    %v1027 = vmax.f32 %v649, 0.0
    %v1028 = vmax.f32 %v652, 0.0
    %v1029 = vmax.f32 %v657, 0.0
    %v1030 = vmax.f32 %v660, 0.0
    %v1031 = vmax.f32 %v665, 0.0
    %v1032 = vmax.f32 %v668, 0.0
    %v1033 = vmax.f32 %v673, 0.0
    %v1034 = vmax.f32 %v676, 0.0
    %v1035 = vmax.f32 %v681, 0.0
    %v1036 = vmax.f32 %v684, 0.0
    %v1037 = vmax.f32 %v689, 0.0
    %v1038 = vmax.f32 %v692, 0.0
    %v1039 = vmax.f32 %v697, 0.0
    %v1040 = vmax.f32 %v700, 0.0
    %v1041 = vmax.f32 %v705, 0.0
    %v1042 = vmax.f32 %v708, 0.0
    %v1043 = vmax.f32 %v713, 0.0
    %v1044 = vmax.f32 %v716, 0.0
    %v1045 = vmax.f32 %v721, 0.0
    %v1046 = vmax.f32 %v724, 0.0
    %v1047 = vmax.f32 %v729, 0.0
    %v1048 = vmax.f32 %v732, 0.0
    %v1049 = vmax.f32 %v737, 0.0
    %v1050 = vmax.f32 %v740, 0.0
    %v1051 = vmax.f32 %v745, 0.0
    %v1052 = vmax.f32 %v748, 0.0
    %v1053 = vmax.f32 %v753, 0.0
    %v1054 = vmax.f32 %v756, 0.0
    %v1055 = vmax.f32 %v761, 0.0
    %v1056 = vmax.f32 %v764, 0.0
    %v1057 = vmax.f32 %v769, 0.0
    %v1058 = vmax.f32 %v772, 0.0
    %v1059 = vmax.f32 %v777, 0.0
    %v1060 = vmax.f32 %v780, 0.0
    %v1061 = vmax.f32 %v785, 0.0
    %v1062 = vmax.f32 %v788, 0.0
    %v1063 = vmax.f32 %v793, 0.0
    %v1064 = vmax.f32 %v796, 0.0
    %v1065 = vmax.f32 %v801, 0.0
    %v1066 = vmax.f32 %v804, 0.0
    %v1067 = vmax.f32 %v809, 0.0
    %v1068 = vmax.f32 %v812, 0.0
    %v1069 = vmax.f32 %v817, 0.0
    %v1070 = vmax.f32 %v820, 0.0
    %v1071 = vmax.f32 %v825, 0.0
    %v1072 = vmax.f32 %v828, 0.0
    %v1073 = vmax.f32 %v833, 0.0
    %v1074 = vmax.f32 %v836, 0.0
    %v1075 = vmax.f32 %v841, 0.0
    %v1076 = vmax.f32 %v844, 0.0
    %v1077 = vmax.f32 %v849, 0.0
    %v1078 = vmax.f32 %v852, 0.0
    %v1079 = vmax.f32 %v857, 0.0
    %v1080 = vmax.f32 %v860, 0.0
    %v1081 = vmax.f32 %v865, 0.0
    %v1082 = vmax.f32 %v868, 0.0
    %v1083 = vmax.f32 %v873, 0.0
    %v1084 = vmax.f32 %v876, 0.0
    %v1085 = vmax.f32 %v881, 0.0
    %v1086 = vmax.f32 %v884, 0.0
    %v1087 = vmax.f32 %v889, 0.0
    %v1088 = vmax.f32 %v892, 0.0
    %v1089 = vmax.f32 %v897, 0.0
    %v1090 = vmax.f32 %v900, 0.0
    %v1091 = vmax.f32 %v905, 0.0
    %v1092 = vmax.f32 %v908, 0.0
    %v1093 = vmax.f32 %v913, 0.0
    %v1094 = vmax.f32 %v916, 0.0
    %v1095 = vmax.f32 %v921, 0.0
    %v1096 = vmax.f32 %v924, 0.0
    %v1097 = vmax.f32 %v929, 0.0
    %v1098 = vmax.f32 %v932, 0.0
    %v1099 = vmax.f32 %v937, 0.0
    %v1100 = vmax.f32 %v940, 0.0
    %v1101 = vmax.f32 %v945, 0.0
    %v1102 = vmax.f32 %v948, 0.0
    %v1103 = vmax.f32 %v953, 0.0
    %v1104 = vmax.f32 %v956, 0.0
    %v1105 = vmax.f32 %v961, 0.0
    %v1106 = vmax.f32 %v964, 0.0
    %v1107 = vmax.f32 %v969, 0.0
    %v1108 = vmax.f32 %v972, 0.0
    %v1109 = vmax.f32 %v977, 0.0
    %v1110 = vmax.f32 %v980, 0.0
    %v1111 = vpack.c.bf16 %v984, %v983
    %v1112 = vpack.c.bf16 %v986, %v985
    %v1113 = vpack.c.bf16 %v988, %v987
    %v1114 = vpack.c.bf16 %v990, %v989
    %v1115 = vpack.c.bf16 %v992, %v991
    %v1116 = vpack.c.bf16 %v994, %v993
    %v1117 = vpack.c.bf16 %v996, %v995
    %v1118 = vpack.c.bf16 %v998, %v997
    %v1119 = vpack.c.bf16 %v1000, %v999
    %v1120 = vpack.c.bf16 %v1002, %v1001
    %v1121 = vpack.c.bf16 %v1004, %v1003
    %v1122 = vpack.c.bf16 %v1006, %v1005
    %v1123 = vpack.c.bf16 %v1008, %v1007
    %v1124 = vpack.c.bf16 %v1010, %v1009
    %v1125 = vpack.c.bf16 %v1012, %v1011
    %v1126 = vpack.c.bf16 %v1014, %v1013
    %v1127 = vpack.c.bf16 %v1016, %v1015
    %v1128 = vpack.c.bf16 %v1018, %v1017
    %v1129 = vpack.c.bf16 %v1020, %v1019
    %v1130 = vpack.c.bf16 %v1022, %v1021
    %v1131 = vpack.c.bf16 %v1024, %v1023
    %v1132 = vpack.c.bf16 %v1026, %v1025
    %v1133 = vpack.c.bf16 %v1028, %v1027
    %v1134 = vpack.c.bf16 %v1030, %v1029
    %v1135 = vpack.c.bf16 %v1032, %v1031
    %v1136 = vpack.c.bf16 %v1034, %v1033
    %v1137 = vpack.c.bf16 %v1036, %v1035
    %v1138 = vpack.c.bf16 %v1038, %v1037
    %v1139 = vpack.c.bf16 %v1040, %v1039
    %v1140 = vpack.c.bf16 %v1042, %v1041
    %v1141 = vpack.c.bf16 %v1044, %v1043
    %v1142 = vpack.c.bf16 %v1046, %v1045
    %v1143 = vpack.c.bf16 %v1048, %v1047
    %v1144 = vpack.c.bf16 %v1050, %v1049
    %v1145 = vpack.c.bf16 %v1052, %v1051
    %v1146 = vpack.c.bf16 %v1054, %v1053
    %v1147 = vpack.c.bf16 %v1056, %v1055
    %v1148 = vpack.c.bf16 %v1058, %v1057
    %v1149 = vpack.c.bf16 %v1060, %v1059
    %v1150 = vpack.c.bf16 %v1062, %v1061
    %v1151 = vpack.c.bf16 %v1064, %v1063
    %v1152 = vpack.c.bf16 %v1066, %v1065
    %v1153 = vpack.c.bf16 %v1068, %v1067
    %v1154 = vpack.c.bf16 %v1070, %v1069
    %v1155 = vpack.c.bf16 %v1072, %v1071
    %v1156 = vpack.c.bf16 %v1074, %v1073
    %v1157 = vpack.c.bf16 %v1076, %v1075
    %v1158 = vpack.c.bf16 %v1078, %v1077
    %v1159 = vpack.c.bf16 %v1080, %v1079
    %v1160 = vpack.c.bf16 %v1082, %v1081
    %v1161 = vpack.c.bf16 %v1084, %v1083
    %v1162 = vpack.c.bf16 %v1086, %v1085
    %v1163 = vpack.c.bf16 %v1088, %v1087
    %v1164 = vpack.c.bf16 %v1090, %v1089
    %v1165 = vpack.c.bf16 %v1092, %v1091
    %v1166 = vpack.c.bf16 %v1094, %v1093
    %v1167 = vpack.c.bf16 %v1096, %v1095
    %v1168 = vpack.c.bf16 %v1098, %v1097
    %v1169 = vpack.c.bf16 %v1100, %v1099
    %v1170 = vpack.c.bf16 %v1102, %v1101
    %v1171 = vpack.c.bf16 %v1104, %v1103
    %v1172 = vpack.c.bf16 %v1106, %v1105
    %v1173 = vpack.c.bf16 %v1108, %v1107
    %v1174 = vpack.c.bf16 %v1110, %v1109
    %v1175 = vld [vmem:[%s3] sm:$0xf]
    %v1176 = vld [vmem:[%s3 + $0x4] sm:$0xf]
    %v1177 = vld [vmem:[%s3 + $0x8] sm:$0xf]
    %v1178 = vld [vmem:[%s3 + $0xc] sm:$0xf]
    %v1179 = vld [vmem:[%s3 + $0x10] sm:$0xf]
    %v1180 = vld [vmem:[%s3 + $0x14] sm:$0xf]
    %v1181 = vld [vmem:[%s3 + $0x18] sm:$0xf]
    %v1182 = vld [vmem:[%s3 + $0x1c] sm:$0xf]
    %v1183 = vld [vmem:[%s3 + $0x20] sm:$0xf]
    %v1184 = vld [vmem:[%s3 + $0x24] sm:$0xf]
    %v1185 = vld [vmem:[%s3 + $0x28] sm:$0xf]
    %v1186 = vld [vmem:[%s3 + $0x2c] sm:$0xf]
    %v1187 = vld [vmem:[%s3 + $0x30] sm:$0xf]
    %v1188 = vld [vmem:[%s3 + $0x34] sm:$0xf]
    %v1189 = vld [vmem:[%s3 + $0x38] sm:$0xf]
    %v1190 = vld [vmem:[%s3 + $0x3c] sm:$0xf]
    %v1191 = vld [vmem:[%s4] sm:$0x1]
    %v1193 = vlaneseq
    %v1194 = vshrl.u32 %v1193, 7
    %v1195 = vsub.s32 0, %v1194
    %v1196 = vrot.slane %v1191, %v1195
    %v1214 = vunpack.c.l.b16 %v1175
    %v1215 = vunpack.c.l.b16 %v1176
    %v1216 = vunpack.c.l.b16 %v1177
    %v1217 = vunpack.c.l.b16 %v1178
    %v1218 = vunpack.c.l.b16 %v1179
    %v1219 = vunpack.c.l.b16 %v1180
    %v1220 = vunpack.c.l.b16 %v1181
    %v1221 = vunpack.c.l.b16 %v1182
    %v1222 = vunpack.c.l.b16 %v1183
    %v1223 = vunpack.c.l.b16 %v1184
    %v1224 = vunpack.c.l.b16 %v1185
    %v1225 = vunpack.c.l.b16 %v1186
    %v1226 = vunpack.c.l.b16 %v1187
    %v1227 = vunpack.c.l.b16 %v1188
    %v1228 = vunpack.c.l.b16 %v1189
    %v1229 = vunpack.c.l.b16 %v1190
    %v1230 = vpack.c.b16 %v1215, %v1214
    %v1231 = vpack.c.b16 %v1217, %v1216
    %v1232 = vpack.c.b16 %v1219, %v1218
    %v1233 = vpack.c.b16 %v1221, %v1220
    %v1234 = vpack.c.b16 %v1223, %v1222
    %v1235 = vpack.c.b16 %v1225, %v1224
    %v1236 = vpack.c.b16 %v1227, %v1226
    %v1237 = vpack.c.b16 %v1229, %v1228
    %1246 = vmatprep.subr.bf16.mxu0 0
    %1247 = vmatpush1.bf16.msra.mxu0 %v1230
    %1248 = vmatprep.subr.bf16.mxu0 0
    %1249 = vmatpush1.bf16.msra.mxu0 %v1231
    %1250 = vmatprep.subr.bf16.mxu0 0
    %1251 = vmatpush1.bf16.msra.mxu0 %v1232
    %1252 = vmatprep.subr.bf16.mxu0 0
    %1253 = vmatpush1.bf16.msra.mxu0 %v1233
    %1254 = vmatprep.subr.bf16.mxu0 0
    %1255 = vmatpush1.bf16.msra.mxu0 %v1234
    %1256 = vmatprep.subr.bf16.mxu0 0
    %1257 = vmatpush1.bf16.msra.mxu0 %v1235
    %1258 = vmatprep.subr.bf16.mxu0 0
    %1259 = vmatpush1.bf16.msra.mxu0 %v1236
    %1260 = vmatprep.subr.bf16.mxu0 0
    %1261 = vmatpush1.bf16.msra.mxu0 %v1237
    %1262 = vmatprep.subr.bf16.mxu0 0
    %1263 = vmatpush1.bf16.msra.mxu0 0
    %1264 = vmatprep.subr.bf16.mxu0 0
    %1265 = vmatpush1.bf16.msra.mxu0 0
    %1266 = vmatprep.subr.bf16.mxu0 0
    %1267 = vmatpush1.bf16.msra.mxu0 0
    %1268 = vmatprep.subr.bf16.mxu0 0
    %1269 = vmatpush1.bf16.msra.mxu0 0
    %1270 = vmatprep.subr.bf16.mxu0 0
    %1271 = vmatpush1.bf16.msra.mxu0 0
    %1272 = vmatprep.subr.bf16.mxu0 0
    %1273 = vmatpush1.bf16.msra.mxu0 0
    %1274 = vmatprep.subr.bf16.mxu0 0
    %1275 = vmatpush1.bf16.msra.mxu0 0
    %1276 = vmatprep.subr.bf16.mxu0 0
    %1277 = vmatpush1.bf16.msra.mxu0 0
    %1278 = vmatprep.mubr.bf16.mxu0 0
    %1279 = vmatmul.mubr.bf16.gmra.mrb[0].mxu0 %v1111
    %v1280 = vpop.f32.mrb[0].mxu0
    %v1281 = vadd.f32 %v1196, %v1280
    %v1282 = vpop.f32.mrb[0].mxu0
    %v1283 = vpop.f32.mrb[0].mxu0
    %v1284 = vadd.f32 %v1196, %v1283
    %v1285 = vpop.f32.mrb[0].mxu0
    %1286 = vmatprep.mubr.bf16.mxu0 0
    %1287 = vmatmul.mubr.bf16.gmra.mrb[0].mxu0 %v1112
    %v1288 = vpop.f32.mrb[0].mxu0
    %v1289 = vadd.f32 %v1196, %v1288
    %v1290 = vpop.f32.mrb[0].mxu0
    %v1291 = vpop.f32.mrb[0].mxu0
    %v1292 = vadd.f32 %v1196, %v1291
    %v1293 = vpop.f32.mrb[0].mxu0
    %1294 = vmatprep.mubr.bf16.mxu0 0
    %1295 = vmatmul.mubr.bf16.gmra.mrb[0].mxu0 %v1113
    %v1296 = vpop.f32.mrb[0].mxu0
    %v1297 = vadd.f32 %v1196, %v1296
    %v1298 = vpop.f32.mrb[0].mxu0
    %v1299 = vpop.f32.mrb[0].mxu0
    %v1300 = vadd.f32 %v1196, %v1299
    %v1301 = vpop.f32.mrb[0].mxu0
    %1302 = vmatprep.mubr.bf16.mxu0 0
    %1303 = vmatmul.mubr.bf16.gmra.mrb[0].mxu0 %v1114
    %v1304 = vpop.f32.mrb[0].mxu0
    %v1305 = vadd.f32 %v1196, %v1304
    %v1306 = vpop.f32.mrb[0].mxu0
    %v1307 = vpop.f32.mrb[0].mxu0
    %v1308 = vadd.f32 %v1196, %v1307
    %v1309 = vpop.f32.mrb[0].mxu0
    %1310 = vmatprep.mubr.bf16.mxu0 0
    %1311 = vmatmul.mubr.bf16.gmra.mrb[0].mxu0 %v1115
    %v1312 = vpop.f32.mrb[0].mxu0
    %v1313 = vadd.f32 %v1196, %v1312
    %v1314 = vpop.f32.mrb[0].mxu0
    %v1315 = vpop.f32.mrb[0].mxu0
    %v1316 = vadd.f32 %v1196, %v1315
    %v1317 = vpop.f32.mrb[0].mxu0
    %1318 = vmatprep.mubr.bf16.mxu0 0
    %1319 = vmatmul.mubr.bf16.gmra.mrb[0].mxu0 %v1116
    %v1320 = vpop.f32.mrb[0].mxu0
    %v1321 = vadd.f32 %v1196, %v1320
    %v1322 = vpop.f32.mrb[0].mxu0
    %v1323 = vpop.f32.mrb[0].mxu0
    %v1324 = vadd.f32 %v1196, %v1323
    %v1325 = vpop.f32.mrb[0].mxu0
    %1326 = vmatprep.mubr.bf16.mxu0 0
    %1327 = vmatmul.mubr.bf16.gmra.mrb[0].mxu0 %v1117
    %v1328 = vpop.f32.mrb[0].mxu0
    %v1329 = vadd.f32 %v1196, %v1328
    %v1330 = vpop.f32.mrb[0].mxu0
    %v1331 = vpop.f32.mrb[0].mxu0
    %v1332 = vadd.f32 %v1196, %v1331
    %v1333 = vpop.f32.mrb[0].mxu0
    %1334 = vmatprep.mubr.bf16.mxu0 0
    %1335 = vmatmul.mubr.bf16.gmra.mrb[0].mxu0 %v1118
    %v1336 = vpop.f32.mrb[0].mxu0
    %v1337 = vadd.f32 %v1196, %v1336
    %v1338 = vpop.f32.mrb[0].mxu0
    %v1339 = vpop.f32.mrb[0].mxu0
    %v1340 = vadd.f32 %v1196, %v1339
    %v1341 = vpop.f32.mrb[0].mxu0
    %1342 = vmatprep.mubr.bf16.mxu0 0
    %1343 = vmatmul.mubr.bf16.gmra.mrb[0].mxu0 %v1119
    %v1344 = vpop.f32.mrb[0].mxu0
    %v1345 = vadd.f32 %v1196, %v1344
    %v1346 = vpop.f32.mrb[0].mxu0
    %v1347 = vpop.f32.mrb[0].mxu0
    %v1348 = vadd.f32 %v1196, %v1347
    %v1349 = vpop.f32.mrb[0].mxu0
    %1350 = vmatprep.mubr.bf16.mxu0 0
    %1351 = vmatmul.mubr.bf16.gmra.mrb[0].mxu0 %v1120
    %v1352 = vpop.f32.mrb[0].mxu0
    %v1353 = vadd.f32 %v1196, %v1352
    %v1354 = vpop.f32.mrb[0].mxu0
    %v1355 = vpop.f32.mrb[0].mxu0
    %v1356 = vadd.f32 %v1196, %v1355
    %v1357 = vpop.f32.mrb[0].mxu0
    %1358 = vmatprep.mubr.bf16.mxu0 0
    %1359 = vmatmul.mubr.bf16.gmra.mrb[0].mxu0 %v1121
    %v1360 = vpop.f32.mrb[0].mxu0
    %v1361 = vadd.f32 %v1196, %v1360
    %v1362 = vpop.f32.mrb[0].mxu0
    %v1363 = vpop.f32.mrb[0].mxu0
    %v1364 = vadd.f32 %v1196, %v1363
    %v1365 = vpop.f32.mrb[0].mxu0
    %1366 = vmatprep.mubr.bf16.mxu0 0
    %1367 = vmatmul.mubr.bf16.gmra.mrb[0].mxu0 %v1122
    %v1368 = vpop.f32.mrb[0].mxu0
    %v1369 = vadd.f32 %v1196, %v1368
    %v1370 = vpop.f32.mrb[0].mxu0
    %v1371 = vpop.f32.mrb[0].mxu0
    %v1372 = vadd.f32 %v1196, %v1371
    %v1373 = vpop.f32.mrb[0].mxu0
    %1374 = vmatprep.mubr.bf16.mxu0 0
    %1375 = vmatmul.mubr.bf16.gmra.mrb[0].mxu0 %v1123
    %v1376 = vpop.f32.mrb[0].mxu0
    %v1377 = vadd.f32 %v1196, %v1376
    %v1378 = vpop.f32.mrb[0].mxu0
    %v1379 = vpop.f32.mrb[0].mxu0
    %v1380 = vadd.f32 %v1196, %v1379
    %v1381 = vpop.f32.mrb[0].mxu0
    %1382 = vmatprep.mubr.bf16.mxu0 0
    %1383 = vmatmul.mubr.bf16.gmra.mrb[0].mxu0 %v1124
    %v1384 = vpop.f32.mrb[0].mxu0
    %v1385 = vadd.f32 %v1196, %v1384
    %v1386 = vpop.f32.mrb[0].mxu0
    %v1387 = vpop.f32.mrb[0].mxu0
    %v1388 = vadd.f32 %v1196, %v1387
    %v1389 = vpop.f32.mrb[0].mxu0
    %1390 = vmatprep.mubr.bf16.mxu0 0
    %1391 = vmatmul.mubr.bf16.gmra.mrb[0].mxu0 %v1125
    %v1392 = vpop.f32.mrb[0].mxu0
    %v1393 = vadd.f32 %v1196, %v1392
    %v1394 = vpop.f32.mrb[0].mxu0
    %v1395 = vpop.f32.mrb[0].mxu0
    %v1396 = vadd.f32 %v1196, %v1395
    %v1397 = vpop.f32.mrb[0].mxu0
    %1398 = vmatprep.mubr.bf16.mxu0 0
    %1399 = vmatmul.mubr.bf16.gmra.mrb[0].mxu0 %v1126
    %v1400 = vpop.f32.mrb[0].mxu0
    %v1401 = vadd.f32 %v1196, %v1400
    %v1402 = vpop.f32.mrb[0].mxu0
    %v1403 = vpop.f32.mrb[0].mxu0
    %v1404 = vadd.f32 %v1196, %v1403
    %v1405 = vpop.f32.mrb[0].mxu0
    %1406 = vmatprep.mubr.bf16.mxu0 0
    %1407 = vmatmul.mubr.bf16.gmra.mrb[0].mxu0 %v1127
    %v1408 = vpop.f32.mrb[0].mxu0
    %v1409 = vadd.f32 %v1196, %v1408
    %v1410 = vpop.f32.mrb[0].mxu0
    %v1411 = vpop.f32.mrb[0].mxu0
    %v1412 = vadd.f32 %v1196, %v1411
    %v1413 = vpop.f32.mrb[0].mxu0
    %1414 = vmatprep.mubr.bf16.mxu0 0
    %1415 = vmatmul.mubr.bf16.gmra.mrb[0].mxu0 %v1128
    %v1416 = vpop.f32.mrb[0].mxu0
    %v1417 = vadd.f32 %v1196, %v1416
    %v1418 = vpop.f32.mrb[0].mxu0
    %v1419 = vpop.f32.mrb[0].mxu0
    %v1420 = vadd.f32 %v1196, %v1419
    %v1421 = vpop.f32.mrb[0].mxu0
    %1422 = vmatprep.mubr.bf16.mxu0 0
    %1423 = vmatmul.mubr.bf16.gmra.mrb[0].mxu0 %v1129
    %v1424 = vpop.f32.mrb[0].mxu0
    %v1425 = vadd.f32 %v1196, %v1424
    %v1426 = vpop.f32.mrb[0].mxu0
    %v1427 = vpop.f32.mrb[0].mxu0
    %v1428 = vadd.f32 %v1196, %v1427
    %v1429 = vpop.f32.mrb[0].mxu0
    %1430 = vmatprep.mubr.bf16.mxu0 0
    %1431 = vmatmul.mubr.bf16.gmra.mrb[0].mxu0 %v1130
    %v1432 = vpop.f32.mrb[0].mxu0
    %v1433 = vadd.f32 %v1196, %v1432
    %v1434 = vpop.f32.mrb[0].mxu0
    %v1435 = vpop.f32.mrb[0].mxu0
    %v1436 = vadd.f32 %v1196, %v1435
    %v1437 = vpop.f32.mrb[0].mxu0
    %1438 = vmatprep.mubr.bf16.mxu0 0
    %1439 = vmatmul.mubr.bf16.gmra.mrb[0].mxu0 %v1131
    %v1440 = vpop.f32.mrb[0].mxu0
    %v1441 = vadd.f32 %v1196, %v1440
    %v1442 = vpop.f32.mrb[0].mxu0
    %v1443 = vpop.f32.mrb[0].mxu0
    %v1444 = vadd.f32 %v1196, %v1443
    %v1445 = vpop.f32.mrb[0].mxu0
    %1446 = vmatprep.mubr.bf16.mxu0 0
    %1447 = vmatmul.mubr.bf16.gmra.mrb[0].mxu0 %v1132
    %v1448 = vpop.f32.mrb[0].mxu0
    %v1449 = vadd.f32 %v1196, %v1448
    %v1450 = vpop.f32.mrb[0].mxu0
    %v1451 = vpop.f32.mrb[0].mxu0
    %v1452 = vadd.f32 %v1196, %v1451
    %v1453 = vpop.f32.mrb[0].mxu0
    %1454 = vmatprep.mubr.bf16.mxu0 0
    %1455 = vmatmul.mubr.bf16.gmra.mrb[0].mxu0 %v1133
    %v1456 = vpop.f32.mrb[0].mxu0
    %v1457 = vadd.f32 %v1196, %v1456
    %v1458 = vpop.f32.mrb[0].mxu0
    %v1459 = vpop.f32.mrb[0].mxu0
    %v1460 = vadd.f32 %v1196, %v1459
    %v1461 = vpop.f32.mrb[0].mxu0
    %1462 = vmatprep.mubr.bf16.mxu0 0
    %1463 = vmatmul.mubr.bf16.gmra.mrb[0].mxu0 %v1134
    %v1464 = vpop.f32.mrb[0].mxu0
    %v1465 = vadd.f32 %v1196, %v1464
    %v1466 = vpop.f32.mrb[0].mxu0
    %v1467 = vpop.f32.mrb[0].mxu0
    %v1468 = vadd.f32 %v1196, %v1467
    %v1469 = vpop.f32.mrb[0].mxu0
    %1470 = vmatprep.mubr.bf16.mxu0 0
    %1471 = vmatmul.mubr.bf16.gmra.mrb[0].mxu0 %v1135
    %v1472 = vpop.f32.mrb[0].mxu0
    %v1473 = vadd.f32 %v1196, %v1472
    %v1474 = vpop.f32.mrb[0].mxu0
    %v1475 = vpop.f32.mrb[0].mxu0
    %v1476 = vadd.f32 %v1196, %v1475
    %v1477 = vpop.f32.mrb[0].mxu0
    %1478 = vmatprep.mubr.bf16.mxu0 0
    %1479 = vmatmul.mubr.bf16.gmra.mrb[0].mxu0 %v1136
    %v1480 = vpop.f32.mrb[0].mxu0
    %v1481 = vadd.f32 %v1196, %v1480
    %v1482 = vpop.f32.mrb[0].mxu0
    %v1483 = vpop.f32.mrb[0].mxu0
    %v1484 = vadd.f32 %v1196, %v1483
    %v1485 = vpop.f32.mrb[0].mxu0
    %1486 = vmatprep.mubr.bf16.mxu0 0
    %1487 = vmatmul.mubr.bf16.gmra.mrb[0].mxu0 %v1137
    %v1488 = vpop.f32.mrb[0].mxu0
    %v1489 = vadd.f32 %v1196, %v1488
    %v1490 = vpop.f32.mrb[0].mxu0
    %v1491 = vpop.f32.mrb[0].mxu0
    %v1492 = vadd.f32 %v1196, %v1491
    %v1493 = vpop.f32.mrb[0].mxu0
    %1494 = vmatprep.mubr.bf16.mxu0 0
    %1495 = vmatmul.mubr.bf16.gmra.mrb[0].mxu0 %v1138
    %v1496 = vpop.f32.mrb[0].mxu0
    %v1497 = vadd.f32 %v1196, %v1496
    %v1498 = vpop.f32.mrb[0].mxu0
    %v1499 = vpop.f32.mrb[0].mxu0
    %v1500 = vadd.f32 %v1196, %v1499
    %v1501 = vpop.f32.mrb[0].mxu0
    %1502 = vmatprep.mubr.bf16.mxu0 0
    %1503 = vmatmul.mubr.bf16.gmra.mrb[0].mxu0 %v1139
    %v1504 = vpop.f32.mrb[0].mxu0
    %v1505 = vadd.f32 %v1196, %v1504
    %v1506 = vpop.f32.mrb[0].mxu0
    %v1507 = vpop.f32.mrb[0].mxu0
    %v1508 = vadd.f32 %v1196, %v1507
    %v1509 = vpop.f32.mrb[0].mxu0
    %1510 = vmatprep.mubr.bf16.mxu0 0
    %1511 = vmatmul.mubr.bf16.gmra.mrb[0].mxu0 %v1140
    %v1512 = vpop.f32.mrb[0].mxu0
    %v1513 = vadd.f32 %v1196, %v1512
    %v1514 = vpop.f32.mrb[0].mxu0
    %v1515 = vpop.f32.mrb[0].mxu0
    %v1516 = vadd.f32 %v1196, %v1515
    %v1517 = vpop.f32.mrb[0].mxu0
    %1518 = vmatprep.mubr.bf16.mxu0 0
    %1519 = vmatmul.mubr.bf16.gmra.mrb[0].mxu0 %v1141
    %v1520 = vpop.f32.mrb[0].mxu0
    %v1521 = vadd.f32 %v1196, %v1520
    %v1522 = vpop.f32.mrb[0].mxu0
    %v1523 = vpop.f32.mrb[0].mxu0
    %v1524 = vadd.f32 %v1196, %v1523
    %v1525 = vpop.f32.mrb[0].mxu0
    %1526 = vmatprep.mubr.bf16.mxu0 0
    %1527 = vmatmul.mubr.bf16.gmra.mrb[0].mxu0 %v1142
    %v1528 = vpop.f32.mrb[0].mxu0
    %v1529 = vadd.f32 %v1196, %v1528
    %v1530 = vpop.f32.mrb[0].mxu0
    %v1531 = vpop.f32.mrb[0].mxu0
    %v1532 = vadd.f32 %v1196, %v1531
    %v1533 = vpop.f32.mrb[0].mxu0
    %1534 = vmatprep.mubr.bf16.mxu0 0
    %1535 = vmatmul.mubr.bf16.gmra.mrb[0].mxu0 %v1143
    %v1536 = vpop.f32.mrb[0].mxu0
    %v1537 = vadd.f32 %v1196, %v1536
    %v1538 = vpop.f32.mrb[0].mxu0
    %v1539 = vpop.f32.mrb[0].mxu0
    %v1540 = vadd.f32 %v1196, %v1539
    %v1541 = vpop.f32.mrb[0].mxu0
    %1542 = vmatprep.mubr.bf16.mxu0 0
    %1543 = vmatmul.mubr.bf16.gmra.mrb[0].mxu0 %v1144
    %v1544 = vpop.f32.mrb[0].mxu0
    %v1545 = vadd.f32 %v1196, %v1544
    %v1546 = vpop.f32.mrb[0].mxu0
    %v1547 = vpop.f32.mrb[0].mxu0
    %v1548 = vadd.f32 %v1196, %v1547
    %v1549 = vpop.f32.mrb[0].mxu0
    %1550 = vmatprep.mubr.bf16.mxu0 0
    %1551 = vmatmul.mubr.bf16.gmra.mrb[0].mxu0 %v1145
    %v1552 = vpop.f32.mrb[0].mxu0
    %v1553 = vadd.f32 %v1196, %v1552
    %v1554 = vpop.f32.mrb[0].mxu0
    %v1555 = vpop.f32.mrb[0].mxu0
    %v1556 = vadd.f32 %v1196, %v1555
    %v1557 = vpop.f32.mrb[0].mxu0
    %1558 = vmatprep.mubr.bf16.mxu0 0
    %1559 = vmatmul.mubr.bf16.gmra.mrb[0].mxu0 %v1146
    %v1560 = vpop.f32.mrb[0].mxu0
    %v1561 = vadd.f32 %v1196, %v1560
    %v1562 = vpop.f32.mrb[0].mxu0
    %v1563 = vpop.f32.mrb[0].mxu0
    %v1564 = vadd.f32 %v1196, %v1563
    %v1565 = vpop.f32.mrb[0].mxu0
    %1566 = vmatprep.mubr.bf16.mxu0 0
    %1567 = vmatmul.mubr.bf16.gmra.mrb[0].mxu0 %v1147
    %v1568 = vpop.f32.mrb[0].mxu0
    %v1569 = vadd.f32 %v1196, %v1568
    %v1570 = vpop.f32.mrb[0].mxu0
    %v1571 = vpop.f32.mrb[0].mxu0
    %v1572 = vadd.f32 %v1196, %v1571
    %v1573 = vpop.f32.mrb[0].mxu0
    %1574 = vmatprep.mubr.bf16.mxu0 0
    %1575 = vmatmul.mubr.bf16.gmra.mrb[0].mxu0 %v1148
    %v1576 = vpop.f32.mrb[0].mxu0
    %v1577 = vadd.f32 %v1196, %v1576
    %v1578 = vpop.f32.mrb[0].mxu0
    %v1579 = vpop.f32.mrb[0].mxu0
    %v1580 = vadd.f32 %v1196, %v1579
    %v1581 = vpop.f32.mrb[0].mxu0
    %1582 = vmatprep.mubr.bf16.mxu0 0
    %1583 = vmatmul.mubr.bf16.gmra.mrb[0].mxu0 %v1149
    %v1584 = vpop.f32.mrb[0].mxu0
    %v1585 = vadd.f32 %v1196, %v1584
    %v1586 = vpop.f32.mrb[0].mxu0
    %v1587 = vpop.f32.mrb[0].mxu0
    %v1588 = vadd.f32 %v1196, %v1587
    %v1589 = vpop.f32.mrb[0].mxu0
    %1590 = vmatprep.mubr.bf16.mxu0 0
    %1591 = vmatmul.mubr.bf16.gmra.mrb[0].mxu0 %v1150
    %v1592 = vpop.f32.mrb[0].mxu0
    %v1593 = vadd.f32 %v1196, %v1592
    %v1594 = vpop.f32.mrb[0].mxu0
    %v1595 = vpop.f32.mrb[0].mxu0
    %v1596 = vadd.f32 %v1196, %v1595
    %v1597 = vpop.f32.mrb[0].mxu0
    %1598 = vmatprep.mubr.bf16.mxu0 0
    %1599 = vmatmul.mubr.bf16.gmra.mrb[0].mxu0 %v1151
    %v1600 = vpop.f32.mrb[0].mxu0
    %v1601 = vadd.f32 %v1196, %v1600
    %v1602 = vpop.f32.mrb[0].mxu0
    %v1603 = vpop.f32.mrb[0].mxu0
    %v1604 = vadd.f32 %v1196, %v1603
    %v1605 = vpop.f32.mrb[0].mxu0
    %1606 = vmatprep.mubr.bf16.mxu0 0
    %1607 = vmatmul.mubr.bf16.gmra.mrb[0].mxu0 %v1152
    %v1608 = vpop.f32.mrb[0].mxu0
    %v1609 = vadd.f32 %v1196, %v1608
    %v1610 = vpop.f32.mrb[0].mxu0
    %v1611 = vpop.f32.mrb[0].mxu0
    %v1612 = vadd.f32 %v1196, %v1611
    %v1613 = vpop.f32.mrb[0].mxu0
    %1614 = vmatprep.mubr.bf16.mxu0 0
    %1615 = vmatmul.mubr.bf16.gmra.mrb[0].mxu0 %v1153
    %v1616 = vpop.f32.mrb[0].mxu0
    %v1617 = vadd.f32 %v1196, %v1616
    %v1618 = vpop.f32.mrb[0].mxu0
    %v1619 = vpop.f32.mrb[0].mxu0
    %v1620 = vadd.f32 %v1196, %v1619
    %v1621 = vpop.f32.mrb[0].mxu0
    %1622 = vmatprep.mubr.bf16.mxu0 0
    %1623 = vmatmul.mubr.bf16.gmra.mrb[0].mxu0 %v1154
    %v1624 = vpop.f32.mrb[0].mxu0
    %v1625 = vadd.f32 %v1196, %v1624
    %v1626 = vpop.f32.mrb[0].mxu0
    %v1627 = vpop.f32.mrb[0].mxu0
    %v1628 = vadd.f32 %v1196, %v1627
    %v1629 = vpop.f32.mrb[0].mxu0
    %1630 = vmatprep.mubr.bf16.mxu0 0
    %1631 = vmatmul.mubr.bf16.gmra.mrb[0].mxu0 %v1155
    %v1632 = vpop.f32.mrb[0].mxu0
    %v1633 = vadd.f32 %v1196, %v1632
    %v1634 = vpop.f32.mrb[0].mxu0
    %v1635 = vpop.f32.mrb[0].mxu0
    %v1636 = vadd.f32 %v1196, %v1635
    %v1637 = vpop.f32.mrb[0].mxu0
    %1638 = vmatprep.mubr.bf16.mxu0 0
    %1639 = vmatmul.mubr.bf16.gmra.mrb[0].mxu0 %v1156
    %v1640 = vpop.f32.mrb[0].mxu0
    %v1641 = vadd.f32 %v1196, %v1640
    %v1642 = vpop.f32.mrb[0].mxu0
    %v1643 = vpop.f32.mrb[0].mxu0
    %v1644 = vadd.f32 %v1196, %v1643
    %v1645 = vpop.f32.mrb[0].mxu0
    %1646 = vmatprep.mubr.bf16.mxu0 0
    %1647 = vmatmul.mubr.bf16.gmra.mrb[0].mxu0 %v1157
    %v1648 = vpop.f32.mrb[0].mxu0
    %v1649 = vadd.f32 %v1196, %v1648
    %v1650 = vpop.f32.mrb[0].mxu0
    %v1651 = vpop.f32.mrb[0].mxu0
    %v1652 = vadd.f32 %v1196, %v1651
    %v1653 = vpop.f32.mrb[0].mxu0
    %1654 = vmatprep.mubr.bf16.mxu0 0
    %1655 = vmatmul.mubr.bf16.gmra.mrb[0].mxu0 %v1158
    %v1656 = vpop.f32.mrb[0].mxu0
    %v1657 = vadd.f32 %v1196, %v1656
    %v1658 = vpop.f32.mrb[0].mxu0
    %v1659 = vpop.f32.mrb[0].mxu0
    %v1660 = vadd.f32 %v1196, %v1659
    %v1661 = vpop.f32.mrb[0].mxu0
    %1662 = vmatprep.mubr.bf16.mxu0 0
    %1663 = vmatmul.mubr.bf16.gmra.mrb[0].mxu0 %v1159
    %v1664 = vpop.f32.mrb[0].mxu0
    %v1665 = vadd.f32 %v1196, %v1664
    %v1666 = vpop.f32.mrb[0].mxu0
    %v1667 = vpop.f32.mrb[0].mxu0
    %v1668 = vadd.f32 %v1196, %v1667
    %v1669 = vpop.f32.mrb[0].mxu0
    %1670 = vmatprep.mubr.bf16.mxu0 0
    %1671 = vmatmul.mubr.bf16.gmra.mrb[0].mxu0 %v1160
    %v1672 = vpop.f32.mrb[0].mxu0
    %v1673 = vadd.f32 %v1196, %v1672
    %v1674 = vpop.f32.mrb[0].mxu0
    %v1675 = vpop.f32.mrb[0].mxu0
    %v1676 = vadd.f32 %v1196, %v1675
    %v1677 = vpop.f32.mrb[0].mxu0
    %1678 = vmatprep.mubr.bf16.mxu0 0
    %1679 = vmatmul.mubr.bf16.gmra.mrb[0].mxu0 %v1161
    %v1680 = vpop.f32.mrb[0].mxu0
    %v1681 = vadd.f32 %v1196, %v1680
    %v1682 = vpop.f32.mrb[0].mxu0
    %v1683 = vpop.f32.mrb[0].mxu0
    %v1684 = vadd.f32 %v1196, %v1683
    %v1685 = vpop.f32.mrb[0].mxu0
    %1686 = vmatprep.mubr.bf16.mxu0 0
    %1687 = vmatmul.mubr.bf16.gmra.mrb[0].mxu0 %v1162
    %v1688 = vpop.f32.mrb[0].mxu0
    %v1689 = vadd.f32 %v1196, %v1688
    %v1690 = vpop.f32.mrb[0].mxu0
    %v1691 = vpop.f32.mrb[0].mxu0
    %v1692 = vadd.f32 %v1196, %v1691
    %v1693 = vpop.f32.mrb[0].mxu0
    %1694 = vmatprep.mubr.bf16.mxu0 0
    %1695 = vmatmul.mubr.bf16.gmra.mrb[0].mxu0 %v1163
    %v1696 = vpop.f32.mrb[0].mxu0
    %v1697 = vadd.f32 %v1196, %v1696
    %v1698 = vpop.f32.mrb[0].mxu0
    %v1699 = vpop.f32.mrb[0].mxu0
    %v1700 = vadd.f32 %v1196, %v1699
    %v1701 = vpop.f32.mrb[0].mxu0
    %1702 = vmatprep.mubr.bf16.mxu0 0
    %1703 = vmatmul.mubr.bf16.gmra.mrb[0].mxu0 %v1164
    %v1704 = vpop.f32.mrb[0].mxu0
    %v1705 = vadd.f32 %v1196, %v1704
    %v1706 = vpop.f32.mrb[0].mxu0
    %v1707 = vpop.f32.mrb[0].mxu0
    %v1708 = vadd.f32 %v1196, %v1707
    %v1709 = vpop.f32.mrb[0].mxu0
    %1710 = vmatprep.mubr.bf16.mxu0 0
    %1711 = vmatmul.mubr.bf16.gmra.mrb[0].mxu0 %v1165
    %v1712 = vpop.f32.mrb[0].mxu0
    %v1713 = vadd.f32 %v1196, %v1712
    %v1714 = vpop.f32.mrb[0].mxu0
    %v1715 = vpop.f32.mrb[0].mxu0
    %v1716 = vadd.f32 %v1196, %v1715
    %v1717 = vpop.f32.mrb[0].mxu0
    %1718 = vmatprep.mubr.bf16.mxu0 0
    %1719 = vmatmul.mubr.bf16.gmra.mrb[0].mxu0 %v1166
    %v1720 = vpop.f32.mrb[0].mxu0
    %v1721 = vadd.f32 %v1196, %v1720
    %v1722 = vpop.f32.mrb[0].mxu0
    %v1723 = vpop.f32.mrb[0].mxu0
    %v1724 = vadd.f32 %v1196, %v1723
    %v1725 = vpop.f32.mrb[0].mxu0
    %1726 = vmatprep.mubr.bf16.mxu0 0
    %1727 = vmatmul.mubr.bf16.gmra.mrb[0].mxu0 %v1167
    %v1728 = vpop.f32.mrb[0].mxu0
    %v1729 = vadd.f32 %v1196, %v1728
    %v1730 = vpop.f32.mrb[0].mxu0
    %v1731 = vpop.f32.mrb[0].mxu0
    %v1732 = vadd.f32 %v1196, %v1731
    %v1733 = vpop.f32.mrb[0].mxu0
    %1734 = vmatprep.mubr.bf16.mxu0 0
    %1735 = vmatmul.mubr.bf16.gmra.mrb[0].mxu0 %v1168
    %v1736 = vpop.f32.mrb[0].mxu0
    %v1737 = vadd.f32 %v1196, %v1736
    %v1738 = vpop.f32.mrb[0].mxu0
    %v1739 = vpop.f32.mrb[0].mxu0
    %v1740 = vadd.f32 %v1196, %v1739
    %v1741 = vpop.f32.mrb[0].mxu0
    %1742 = vmatprep.mubr.bf16.mxu0 0
    %1743 = vmatmul.mubr.bf16.gmra.mrb[0].mxu0 %v1169
    %v1744 = vpop.f32.mrb[0].mxu0
    %v1745 = vadd.f32 %v1196, %v1744
    %v1746 = vpop.f32.mrb[0].mxu0
    %v1747 = vpop.f32.mrb[0].mxu0
    %v1748 = vadd.f32 %v1196, %v1747
    %v1749 = vpop.f32.mrb[0].mxu0
    %1750 = vmatprep.mubr.bf16.mxu0 0
    %1751 = vmatmul.mubr.bf16.gmra.mrb[0].mxu0 %v1170
    %v1752 = vpop.f32.mrb[0].mxu0
    %v1753 = vadd.f32 %v1196, %v1752
    %v1754 = vpop.f32.mrb[0].mxu0
    %v1755 = vpop.f32.mrb[0].mxu0
    %v1756 = vadd.f32 %v1196, %v1755
    %v1757 = vpop.f32.mrb[0].mxu0
    %1758 = vmatprep.mubr.bf16.mxu0 0
    %1759 = vmatmul.mubr.bf16.gmra.mrb[0].mxu0 %v1171
    %v1760 = vpop.f32.mrb[0].mxu0
    %v1761 = vadd.f32 %v1196, %v1760
    %v1762 = vpop.f32.mrb[0].mxu0
    %v1763 = vpop.f32.mrb[0].mxu0
    %v1764 = vadd.f32 %v1196, %v1763
    %v1765 = vpop.f32.mrb[0].mxu0
    %1766 = vmatprep.mubr.bf16.mxu0 0
    %1767 = vmatmul.mubr.bf16.gmra.mrb[0].mxu0 %v1172
    %v1768 = vpop.f32.mrb[0].mxu0
    %v1769 = vadd.f32 %v1196, %v1768
    %v1770 = vpop.f32.mrb[0].mxu0
    %v1771 = vpop.f32.mrb[0].mxu0
    %v1772 = vadd.f32 %v1196, %v1771
    %v1773 = vpop.f32.mrb[0].mxu0
    %1774 = vmatprep.mubr.bf16.mxu0 0
    %1775 = vmatmul.mubr.bf16.gmra.mrb[0].mxu0 %v1173
    %v1776 = vpop.f32.mrb[0].mxu0
    %v1777 = vadd.f32 %v1196, %v1776
    %v1778 = vpop.f32.mrb[0].mxu0
    %v1779 = vpop.f32.mrb[0].mxu0
    %v1780 = vadd.f32 %v1196, %v1779
    %v1781 = vpop.f32.mrb[0].mxu0
    %1782 = vmatprep.mubr.bf16.mxu0 0
    %1783 = vmatmul.mubr.bf16.gmra.mrb[0].mxu0 %v1174
    %v1784 = vpop.f32.mrb[0].mxu0
    %v1785 = vadd.f32 %v1196, %v1784
    %v1786 = vpop.f32.mrb[0].mxu0
    %v1787 = vpop.f32.mrb[0].mxu0
    %v1788 = vadd.f32 %v1196, %v1787
    %v1789 = vpop.f32.mrb[0].mxu0
    %1790 = vdwg.mxu0
    %v1791 = vmax.f32 %v1281, 0.0
    %v1792 = vmax.f32 %v1284, 0.0
    %v1793 = vmax.f32 %v1289, 0.0
    %v1794 = vmax.f32 %v1292, 0.0
    %v1795 = vmax.f32 %v1297, 0.0
    %v1796 = vmax.f32 %v1300, 0.0
    %v1797 = vmax.f32 %v1305, 0.0
    %v1798 = vmax.f32 %v1308, 0.0
    %v1799 = vmax.f32 %v1313, 0.0
    %v1800 = vmax.f32 %v1316, 0.0
    %v1801 = vmax.f32 %v1321, 0.0
    %v1802 = vmax.f32 %v1324, 0.0
    %v1803 = vmax.f32 %v1329, 0.0
    %v1804 = vmax.f32 %v1332, 0.0
    %v1805 = vmax.f32 %v1337, 0.0
    %v1806 = vmax.f32 %v1340, 0.0
    %v1807 = vmax.f32 %v1345, 0.0
    %v1808 = vmax.f32 %v1348, 0.0
    %v1809 = vmax.f32 %v1353, 0.0
    %v1810 = vmax.f32 %v1356, 0.0
    %v1811 = vmax.f32 %v1361, 0.0
    %v1812 = vmax.f32 %v1364, 0.0
    %v1813 = vmax.f32 %v1369, 0.0
    %v1814 = vmax.f32 %v1372, 0.0
    %v1815 = vmax.f32 %v1377, 0.0
    %v1816 = vmax.f32 %v1380, 0.0
    %v1817 = vmax.f32 %v1385, 0.0
    %v1818 = vmax.f32 %v1388, 0.0
    %v1819 = vmax.f32 %v1393, 0.0
    %v1820 = vmax.f32 %v1396, 0.0
    %v1821 = vmax.f32 %v1401, 0.0
    %v1822 = vmax.f32 %v1404, 0.0
    %v1823 = vmax.f32 %v1409, 0.0
    %v1824 = vmax.f32 %v1412, 0.0
    %v1825 = vmax.f32 %v1417, 0.0
    %v1826 = vmax.f32 %v1420, 0.0
    %v1827 = vmax.f32 %v1425, 0.0
    %v1828 = vmax.f32 %v1428, 0.0
    %v1829 = vmax.f32 %v1433, 0.0
    %v1830 = vmax.f32 %v1436, 0.0
    %v1831 = vmax.f32 %v1441, 0.0
    %v1832 = vmax.f32 %v1444, 0.0
    %v1833 = vmax.f32 %v1449, 0.0
    %v1834 = vmax.f32 %v1452, 0.0
    %v1835 = vmax.f32 %v1457, 0.0
    %v1836 = vmax.f32 %v1460, 0.0
    %v1837 = vmax.f32 %v1465, 0.0
    %v1838 = vmax.f32 %v1468, 0.0
    %v1839 = vmax.f32 %v1473, 0.0
    %v1840 = vmax.f32 %v1476, 0.0
    %v1841 = vmax.f32 %v1481, 0.0
    %v1842 = vmax.f32 %v1484, 0.0
    %v1843 = vmax.f32 %v1489, 0.0
    %v1844 = vmax.f32 %v1492, 0.0
    %v1845 = vmax.f32 %v1497, 0.0
    %v1846 = vmax.f32 %v1500, 0.0
    %v1847 = vmax.f32 %v1505, 0.0
    %v1848 = vmax.f32 %v1508, 0.0
    %v1849 = vmax.f32 %v1513, 0.0
    %v1850 = vmax.f32 %v1516, 0.0
    %v1851 = vmax.f32 %v1521, 0.0
    %v1852 = vmax.f32 %v1524, 0.0
    %v1853 = vmax.f32 %v1529, 0.0
    %v1854 = vmax.f32 %v1532, 0.0
    %v1855 = vmax.f32 %v1537, 0.0
    %v1856 = vmax.f32 %v1540, 0.0
    %v1857 = vmax.f32 %v1545, 0.0
    %v1858 = vmax.f32 %v1548, 0.0
    %v1859 = vmax.f32 %v1553, 0.0
    %v1860 = vmax.f32 %v1556, 0.0
    %v1861 = vmax.f32 %v1561, 0.0
    %v1862 = vmax.f32 %v1564, 0.0
    %v1863 = vmax.f32 %v1569, 0.0
    %v1864 = vmax.f32 %v1572, 0.0
    %v1865 = vmax.f32 %v1577, 0.0
    %v1866 = vmax.f32 %v1580, 0.0
    %v1867 = vmax.f32 %v1585, 0.0
    %v1868 = vmax.f32 %v1588, 0.0
    %v1869 = vmax.f32 %v1593, 0.0
    %v1870 = vmax.f32 %v1596, 0.0
    %v1871 = vmax.f32 %v1601, 0.0
    %v1872 = vmax.f32 %v1604, 0.0
    %v1873 = vmax.f32 %v1609, 0.0
    %v1874 = vmax.f32 %v1612, 0.0
    %v1875 = vmax.f32 %v1617, 0.0
    %v1876 = vmax.f32 %v1620, 0.0
    %v1877 = vmax.f32 %v1625, 0.0
    %v1878 = vmax.f32 %v1628, 0.0
    %v1879 = vmax.f32 %v1633, 0.0
    %v1880 = vmax.f32 %v1636, 0.0
    %v1881 = vmax.f32 %v1641, 0.0
    %v1882 = vmax.f32 %v1644, 0.0
    %v1883 = vmax.f32 %v1649, 0.0
    %v1884 = vmax.f32 %v1652, 0.0
    %v1885 = vmax.f32 %v1657, 0.0
    %v1886 = vmax.f32 %v1660, 0.0
    %v1887 = vmax.f32 %v1665, 0.0
    %v1888 = vmax.f32 %v1668, 0.0
    %v1889 = vmax.f32 %v1673, 0.0
    %v1890 = vmax.f32 %v1676, 0.0
    %v1891 = vmax.f32 %v1681, 0.0
    %v1892 = vmax.f32 %v1684, 0.0
    %v1893 = vmax.f32 %v1689, 0.0
    %v1894 = vmax.f32 %v1692, 0.0
    %v1895 = vmax.f32 %v1697, 0.0
    %v1896 = vmax.f32 %v1700, 0.0
    %v1897 = vmax.f32 %v1705, 0.0
    %v1898 = vmax.f32 %v1708, 0.0
    %v1899 = vmax.f32 %v1713, 0.0
    %v1900 = vmax.f32 %v1716, 0.0
    %v1901 = vmax.f32 %v1721, 0.0
    %v1902 = vmax.f32 %v1724, 0.0
    %v1903 = vmax.f32 %v1729, 0.0
    %v1904 = vmax.f32 %v1732, 0.0
    %v1905 = vmax.f32 %v1737, 0.0
    %v1906 = vmax.f32 %v1740, 0.0
    %v1907 = vmax.f32 %v1745, 0.0
    %v1908 = vmax.f32 %v1748, 0.0
    %v1909 = vmax.f32 %v1753, 0.0
    %v1910 = vmax.f32 %v1756, 0.0
    %v1911 = vmax.f32 %v1761, 0.0
    %v1912 = vmax.f32 %v1764, 0.0
    %v1913 = vmax.f32 %v1769, 0.0
    %v1914 = vmax.f32 %v1772, 0.0
    %v1915 = vmax.f32 %v1777, 0.0
    %v1916 = vmax.f32 %v1780, 0.0
    %v1917 = vmax.f32 %v1785, 0.0
    %v1918 = vmax.f32 %v1788, 0.0
    %v1919 = vld [vmem:[%s5] sm:$0x1]
    %v1920 = vpack.c.bf16 %v1792, %v1791
    %v1921 = vpack.c.bf16 %v1794, %v1793
    %v1922 = vpack.c.bf16 %v1796, %v1795
    %v1923 = vpack.c.bf16 %v1798, %v1797
    %v1924 = vpack.c.bf16 %v1800, %v1799
    %v1925 = vpack.c.bf16 %v1802, %v1801
    %v1926 = vpack.c.bf16 %v1804, %v1803
    %v1927 = vpack.c.bf16 %v1806, %v1805
    %v1928 = vpack.c.bf16 %v1808, %v1807
    %v1929 = vpack.c.bf16 %v1810, %v1809
    %v1930 = vpack.c.bf16 %v1812, %v1811
    %v1931 = vpack.c.bf16 %v1814, %v1813
    %v1932 = vpack.c.bf16 %v1816, %v1815
    %v1933 = vpack.c.bf16 %v1818, %v1817
    %v1934 = vpack.c.bf16 %v1820, %v1819
    %v1935 = vpack.c.bf16 %v1822, %v1821
    %v1936 = vpack.c.bf16 %v1824, %v1823
    %v1937 = vpack.c.bf16 %v1826, %v1825
    %v1938 = vpack.c.bf16 %v1828, %v1827
    %v1939 = vpack.c.bf16 %v1830, %v1829
    %v1940 = vpack.c.bf16 %v1832, %v1831
    %v1941 = vpack.c.bf16 %v1834, %v1833
    %v1942 = vpack.c.bf16 %v1836, %v1835
    %v1943 = vpack.c.bf16 %v1838, %v1837
    %v1944 = vpack.c.bf16 %v1840, %v1839
    %v1945 = vpack.c.bf16 %v1842, %v1841
    %v1946 = vpack.c.bf16 %v1844, %v1843
    %v1947 = vpack.c.bf16 %v1846, %v1845
    %v1948 = vpack.c.bf16 %v1848, %v1847
    %v1949 = vpack.c.bf16 %v1850, %v1849
    %v1950 = vpack.c.bf16 %v1852, %v1851
    %v1951 = vpack.c.bf16 %v1854, %v1853
    %v1952 = vpack.c.bf16 %v1856, %v1855
    %v1953 = vpack.c.bf16 %v1858, %v1857
    %v1954 = vpack.c.bf16 %v1860, %v1859
    %v1955 = vpack.c.bf16 %v1862, %v1861
    %v1956 = vpack.c.bf16 %v1864, %v1863
    %v1957 = vpack.c.bf16 %v1866, %v1865
    %v1958 = vpack.c.bf16 %v1868, %v1867
    %v1959 = vpack.c.bf16 %v1870, %v1869
    %v1960 = vpack.c.bf16 %v1872, %v1871
    %v1961 = vpack.c.bf16 %v1874, %v1873
    %v1962 = vpack.c.bf16 %v1876, %v1875
    %v1963 = vpack.c.bf16 %v1878, %v1877
    %v1964 = vpack.c.bf16 %v1880, %v1879
    %v1965 = vpack.c.bf16 %v1882, %v1881
    %v1966 = vpack.c.bf16 %v1884, %v1883
    %v1967 = vpack.c.bf16 %v1886, %v1885
    %v1968 = vpack.c.bf16 %v1888, %v1887
    %v1969 = vpack.c.bf16 %v1890, %v1889
    %v1970 = vpack.c.bf16 %v1892, %v1891
    %v1971 = vpack.c.bf16 %v1894, %v1893
    %v1972 = vpack.c.bf16 %v1896, %v1895
    %v1973 = vpack.c.bf16 %v1898, %v1897
    %v1974 = vpack.c.bf16 %v1900, %v1899
    %v1975 = vpack.c.bf16 %v1902, %v1901
    %v1976 = vpack.c.bf16 %v1904, %v1903
    %v1977 = vpack.c.bf16 %v1906, %v1905
    %v1978 = vpack.c.bf16 %v1908, %v1907
    %v1979 = vpack.c.bf16 %v1910, %v1909
    %v1980 = vpack.c.bf16 %v1912, %v1911
    %v1981 = vpack.c.bf16 %v1914, %v1913
    %v1982 = vpack.c.bf16 %v1916, %v1915
    %v1983 = vpack.c.bf16 %v1918, %v1917
    %v1984 = vld [vmem:[#allocation2] sm:$0x1]
    %1986 = vset.pattern.permute.xlu0 0
    %1987 = vperm.xlu0 %1986, %v1984
    %v1988 = vpop.permute.xlu0 %1987
    %v1990 = vlaneseq
    %v1991 = vshrl.u32 %v1990, 7
    %v1992 = vsub.s32 0, %v1991
    %v1993 = vrot.slane %v1988, %v1992
    %vm1994 = vcmask 523264
    %v1996 = vsel %vm1994, %v1919, 0
    %v1999 = vsel %vm1994, %v1920, 0
    %v2002 = vsel %vm1994, %v1921, 0
    %v2005 = vsel %vm1994, %v1922, 0
    %v2008 = vsel %vm1994, %v1923, 0
    %v2011 = vsel %vm1994, %v1924, 0
    %v2014 = vsel %vm1994, %v1925, 0
    %v2017 = vsel %vm1994, %v1926, 0
    %v2020 = vsel %vm1994, %v1927, 0
    %v2023 = vsel %vm1994, %v1928, 0
    %v2026 = vsel %vm1994, %v1929, 0
    %v2029 = vsel %vm1994, %v1930, 0
    %v2032 = vsel %vm1994, %v1931, 0
    %v2035 = vsel %vm1994, %v1932, 0
    %v2038 = vsel %vm1994, %v1933, 0
    %v2041 = vsel %vm1994, %v1934, 0
    %v2044 = vsel %vm1994, %v1935, 0
    %v2047 = vsel %vm1994, %v1936, 0
    %v2050 = vsel %vm1994, %v1937, 0
    %v2053 = vsel %vm1994, %v1938, 0
    %v2056 = vsel %vm1994, %v1939, 0
    %v2059 = vsel %vm1994, %v1940, 0
    %v2062 = vsel %vm1994, %v1941, 0
    %v2065 = vsel %vm1994, %v1942, 0
    %v2068 = vsel %vm1994, %v1943, 0
    %v2071 = vsel %vm1994, %v1944, 0
    %v2074 = vsel %vm1994, %v1945, 0
    %v2077 = vsel %vm1994, %v1946, 0
    %v2080 = vsel %vm1994, %v1947, 0
    %v2083 = vsel %vm1994, %v1948, 0
    %v2086 = vsel %vm1994, %v1949, 0
    %v2089 = vsel %vm1994, %v1950, 0
    %v2092 = vsel %vm1994, %v1951, 0
    %v2095 = vsel %vm1994, %v1952, 0
    %v2098 = vsel %vm1994, %v1953, 0
    %v2101 = vsel %vm1994, %v1954, 0
    %v2104 = vsel %vm1994, %v1955, 0
    %v2107 = vsel %vm1994, %v1956, 0
    %v2110 = vsel %vm1994, %v1957, 0
    %v2113 = vsel %vm1994, %v1958, 0
    %v2116 = vsel %vm1994, %v1959, 0
    %v2119 = vsel %vm1994, %v1960, 0
    %v2122 = vsel %vm1994, %v1961, 0
    %v2125 = vsel %vm1994, %v1962, 0
    %v2128 = vsel %vm1994, %v1963, 0
    %v2131 = vsel %vm1994, %v1964, 0
    %v2134 = vsel %vm1994, %v1965, 0
    %v2137 = vsel %vm1994, %v1966, 0
    %v2140 = vsel %vm1994, %v1967, 0
    %v2143 = vsel %vm1994, %v1968, 0
    %v2146 = vsel %vm1994, %v1969, 0
    %v2149 = vsel %vm1994, %v1970, 0
    %v2152 = vsel %vm1994, %v1971, 0
    %v2155 = vsel %vm1994, %v1972, 0
    %v2158 = vsel %vm1994, %v1973, 0
    %v2161 = vsel %vm1994, %v1974, 0
    %v2164 = vsel %vm1994, %v1975, 0
    %v2167 = vsel %vm1994, %v1976, 0
    %v2170 = vsel %vm1994, %v1977, 0
    %v2173 = vsel %vm1994, %v1978, 0
    %v2176 = vsel %vm1994, %v1979, 0
    %v2179 = vsel %vm1994, %v1980, 0
    %v2182 = vsel %vm1994, %v1981, 0
    %v2185 = vsel %vm1994, %v1982, 0
    %v2188 = vsel %vm1994, %v1983, 0
    %2190 = vmatprep.subr.bf16.mxu0 0
    %2191 = vmatpush1.bf16.xpose.msra.mxu0 %v1999
    %2192 = vmatprep.subr.bf16.mxu0 0
    %2193 = vmatpush1.bf16.xpose.msra.mxu0 %v2002
    %2194 = vmatprep.subr.bf16.mxu0 0
    %2195 = vmatpush1.bf16.xpose.msra.mxu0 %v2005
    %2196 = vmatprep.subr.bf16.mxu0 0
    %2197 = vmatpush1.bf16.xpose.msra.mxu0 %v2008
    %2198 = vmatprep.subr.bf16.mxu0 0
    %2199 = vmatpush1.bf16.xpose.msra.mxu0 %v2011
    %2200 = vmatprep.subr.bf16.mxu0 0
    %2201 = vmatpush1.bf16.xpose.msra.mxu0 %v2014
    %2202 = vmatprep.subr.bf16.mxu0 0
    %2203 = vmatpush1.bf16.xpose.msra.mxu0 %v2017
    %2204 = vmatprep.subr.bf16.mxu0 0
    %2205 = vmatpush1.bf16.xpose.msra.mxu0 %v2020
    %2206 = vmatprep.subr.bf16.mxu0 0
    %2207 = vmatpush1.bf16.xpose.msra.mxu0 %v2023
    %2208 = vmatprep.subr.bf16.mxu0 0
    %2209 = vmatpush1.bf16.xpose.msra.mxu0 %v2026
    %2210 = vmatprep.subr.bf16.mxu0 0
    %2211 = vmatpush1.bf16.xpose.msra.mxu0 %v2029
    %2212 = vmatprep.subr.bf16.mxu0 0
    %2213 = vmatpush1.bf16.xpose.msra.mxu0 %v2032
    %2214 = vmatprep.subr.bf16.mxu0 0
    %2215 = vmatpush1.bf16.xpose.msra.mxu0 %v2035
    %2216 = vmatprep.subr.bf16.mxu0 0
    %2217 = vmatpush1.bf16.xpose.msra.mxu0 %v2038
    %2218 = vmatprep.subr.bf16.mxu0 0
    %2219 = vmatpush1.bf16.xpose.msra.mxu0 %v2041
    %2220 = vmatprep.subr.bf16.mxu0 0
    %2221 = vmatpush1.bf16.xpose.msra.mxu0 %v2044
    %2222 = vmatprep.mubr.bf16.mxu0 0
    %2223 = vmatmul.mubr.bf16.gmra.mrb[0].mxu0 %v1996
    %v2224 = vpop.f32.mrb[0].mxu0
    %v2225 = vadd.f32 %v1993, %v2224
    %v2226 = vpop.f32.mrb[0].mxu0
    %v2227 = vadd.f32 %v1993, %v2226
    %v2228 = vpop.f32.mrb[0].mxu0
    %v2229 = vpop.f32.mrb[0].mxu0
    %2230 = vdwg.mxu0
    %2231 = vmatprep.subr.bf16.mxu0 0
    %2232 = vmatpush1.bf16.xpose.msra.mxu0 %v2047
    %2233 = vmatprep.subr.bf16.mxu0 0
    %2234 = vmatpush1.bf16.xpose.msra.mxu0 %v2050
    %2235 = vmatprep.subr.bf16.mxu0 0
    %2236 = vmatpush1.bf16.xpose.msra.mxu0 %v2053
    %2237 = vmatprep.subr.bf16.mxu0 0
    %2238 = vmatpush1.bf16.xpose.msra.mxu0 %v2056
    %2239 = vmatprep.subr.bf16.mxu0 0
    %2240 = vmatpush1.bf16.xpose.msra.mxu0 %v2059
    %2241 = vmatprep.subr.bf16.mxu0 0
    %2242 = vmatpush1.bf16.xpose.msra.mxu0 %v2062
    %2243 = vmatprep.subr.bf16.mxu0 0
    %2244 = vmatpush1.bf16.xpose.msra.mxu0 %v2065
    %2245 = vmatprep.subr.bf16.mxu0 0
    %2246 = vmatpush1.bf16.xpose.msra.mxu0 %v2068
    %2247 = vmatprep.subr.bf16.mxu0 0
    %2248 = vmatpush1.bf16.xpose.msra.mxu0 %v2071
    %2249 = vmatprep.subr.bf16.mxu0 0
    %2250 = vmatpush1.bf16.xpose.msra.mxu0 %v2074
    %2251 = vmatprep.subr.bf16.mxu0 0
    %2252 = vmatpush1.bf16.xpose.msra.mxu0 %v2077
    %2253 = vmatprep.subr.bf16.mxu0 0
    %2254 = vmatpush1.bf16.xpose.msra.mxu0 %v2080
    %2255 = vmatprep.subr.bf16.mxu0 0
    %2256 = vmatpush1.bf16.xpose.msra.mxu0 %v2083
    %2257 = vmatprep.subr.bf16.mxu0 0
    %2258 = vmatpush1.bf16.xpose.msra.mxu0 %v2086
    %2259 = vmatprep.subr.bf16.mxu0 0
    %2260 = vmatpush1.bf16.xpose.msra.mxu0 %v2089
    %2261 = vmatprep.subr.bf16.mxu0 0
    %2262 = vmatpush1.bf16.xpose.msra.mxu0 %v2092
    %2263 = vmatprep.mubr.bf16.mxu0 0
    %2264 = vmatmul.mubr.bf16.gmra.mrb[0].mxu0 %v1996
    %v2265 = vpop.f32.mrb[0].mxu0
    %v2266 = vadd.f32 %v1993, %v2265
    %v2267 = vpop.f32.mrb[0].mxu0
    %v2268 = vadd.f32 %v1993, %v2267
    %v2269 = vpop.f32.mrb[0].mxu0
    %v2270 = vpop.f32.mrb[0].mxu0
    %2271 = vdwg.mxu0
    %2272 = vmatprep.subr.bf16.mxu0 0
    %2273 = vmatpush1.bf16.xpose.msra.mxu0 %v2095
    %2274 = vmatprep.subr.bf16.mxu0 0
    %2275 = vmatpush1.bf16.xpose.msra.mxu0 %v2098
    %2276 = vmatprep.subr.bf16.mxu0 0
    %2277 = vmatpush1.bf16.xpose.msra.mxu0 %v2101
    %2278 = vmatprep.subr.bf16.mxu0 0
    %2279 = vmatpush1.bf16.xpose.msra.mxu0 %v2104
    %2280 = vmatprep.subr.bf16.mxu0 0
    %2281 = vmatpush1.bf16.xpose.msra.mxu0 %v2107
    %2282 = vmatprep.subr.bf16.mxu0 0
    %2283 = vmatpush1.bf16.xpose.msra.mxu0 %v2110
    %2284 = vmatprep.subr.bf16.mxu0 0
    %2285 = vmatpush1.bf16.xpose.msra.mxu0 %v2113
    %2286 = vmatprep.subr.bf16.mxu0 0
    %2287 = vmatpush1.bf16.xpose.msra.mxu0 %v2116
    %2288 = vmatprep.subr.bf16.mxu0 0
    %2289 = vmatpush1.bf16.xpose.msra.mxu0 %v2119
    %2290 = vmatprep.subr.bf16.mxu0 0
    %2291 = vmatpush1.bf16.xpose.msra.mxu0 %v2122
    %2292 = vmatprep.subr.bf16.mxu0 0
    %2293 = vmatpush1.bf16.xpose.msra.mxu0 %v2125
    %2294 = vmatprep.subr.bf16.mxu0 0
    %2295 = vmatpush1.bf16.xpose.msra.mxu0 %v2128
    %2296 = vmatprep.subr.bf16.mxu0 0
    %2297 = vmatpush1.bf16.xpose.msra.mxu0 %v2131
    %2298 = vmatprep.subr.bf16.mxu0 0
    %2299 = vmatpush1.bf16.xpose.msra.mxu0 %v2134
    %2300 = vmatprep.subr.bf16.mxu0 0
    %2301 = vmatpush1.bf16.xpose.msra.mxu0 %v2137
    %2302 = vmatprep.subr.bf16.mxu0 0
    %2303 = vmatpush1.bf16.xpose.msra.mxu0 %v2140
    %2304 = vmatprep.mubr.bf16.mxu0 0
    %2305 = vmatmul.mubr.bf16.gmra.mrb[0].mxu0 %v1996
    %v2306 = vpop.f32.mrb[0].mxu0
    %v2307 = vadd.f32 %v1993, %v2306
    %v2308 = vpop.f32.mrb[0].mxu0
    %v2309 = vadd.f32 %v1993, %v2308
    %v2310 = vpop.f32.mrb[0].mxu0
    %v2311 = vpop.f32.mrb[0].mxu0
    %2312 = vdwg.mxu0
    %2313 = vmatprep.subr.bf16.mxu0 0
    %2314 = vmatpush1.bf16.xpose.msra.mxu0 %v2143
    %2315 = vmatprep.subr.bf16.mxu0 0
    %2316 = vmatpush1.bf16.xpose.msra.mxu0 %v2146
    %2317 = vmatprep.subr.bf16.mxu0 0
    %2318 = vmatpush1.bf16.xpose.msra.mxu0 %v2149
    %2319 = vmatprep.subr.bf16.mxu0 0
    %2320 = vmatpush1.bf16.xpose.msra.mxu0 %v2152
    %2321 = vmatprep.subr.bf16.mxu0 0
    %2322 = vmatpush1.bf16.xpose.msra.mxu0 %v2155
    %2323 = vmatprep.subr.bf16.mxu0 0
    %2324 = vmatpush1.bf16.xpose.msra.mxu0 %v2158
    %2325 = vmatprep.subr.bf16.mxu0 0
    %2326 = vmatpush1.bf16.xpose.msra.mxu0 %v2161
    %2327 = vmatprep.subr.bf16.mxu0 0
    %2328 = vmatpush1.bf16.xpose.msra.mxu0 %v2164
    %2329 = vmatprep.subr.bf16.mxu0 0
    %2330 = vmatpush1.bf16.xpose.msra.mxu0 %v2167
    %2331 = vmatprep.subr.bf16.mxu0 0
    %2332 = vmatpush1.bf16.xpose.msra.mxu0 %v2170
    %2333 = vmatprep.subr.bf16.mxu0 0
    %2334 = vmatpush1.bf16.xpose.msra.mxu0 %v2173
    %2335 = vmatprep.subr.bf16.mxu0 0
    %2336 = vmatpush1.bf16.xpose.msra.mxu0 %v2176
    %2337 = vmatprep.subr.bf16.mxu0 0
    %2338 = vmatpush1.bf16.xpose.msra.mxu0 %v2179
    %2339 = vmatprep.subr.bf16.mxu0 0
    %2340 = vmatpush1.bf16.xpose.msra.mxu0 %v2182
    %2341 = vmatprep.subr.bf16.mxu0 0
    %2342 = vmatpush1.bf16.xpose.msra.mxu0 %v2185
    %2343 = vmatprep.subr.bf16.mxu0 0
    %2344 = vmatpush1.bf16.xpose.msra.mxu0 %v2188
    %2345 = vmatprep.mubr.bf16.mxu0 0
    %2346 = vmatmul.mubr.bf16.gmra.mrb[0].mxu0 %v1996
    %v2347 = vpop.f32.mrb[0].mxu0
    %v2348 = vadd.f32 %v1993, %v2347
    %v2349 = vpop.f32.mrb[0].mxu0
    %v2350 = vadd.f32 %v1993, %v2349
    %v2351 = vpop.f32.mrb[0].mxu0
    %v2352 = vpop.f32.mrb[0].mxu0
    %2353 = vdwg.mxu0
    %v2354 = vxor.u32 %v2225, 2147483648
    %v2355 = vxor.u32 %v2227, 2147483648
    %v2356 = vxor.u32 %v2266, 2147483648
    %v2357 = vxor.u32 %v2268, 2147483648
    %v2358 = vxor.u32 %v2307, 2147483648
    %v2359 = vxor.u32 %v2309, 2147483648
    %v2360 = vxor.u32 %v2348, 2147483648
    %v2361 = vxor.u32 %v2350, 2147483648
    %v2362 = vmul.f32 %v2354, 1.442695
    %v2363 = vpow.pop %v2362
    %v2364 = vmul.f32 %v2355, 1.442695
    %v2365 = vpow.pop %v2364
    %v2366 = vmul.f32 %v2356, 1.442695
    %v2367 = vpow.pop %v2366
    %v2368 = vmul.f32 %v2357, 1.442695
    %v2369 = vpow.pop %v2368
    %v2370 = vmul.f32 %v2358, 1.442695
    %v2371 = vpow.pop %v2370
    %v2372 = vmul.f32 %v2359, 1.442695
    %v2373 = vpow.pop %v2372
    %v2374 = vmul.f32 %v2360, 1.442695
    %v2375 = vpow.pop %v2374
    %v2376 = vmul.f32 %v2361, 1.442695
    %v2377 = vpow.pop %v2376
    %v2378 = vadd.f32 %v2363, 1.0
    %v2379 = vadd.f32 %v2365, 1.0
    %v2380 = vadd.f32 %v2367, 1.0
    %v2381 = vadd.f32 %v2369, 1.0
    %v2382 = vadd.f32 %v2371, 1.0
    %v2383 = vadd.f32 %v2373, 1.0
    %v2384 = vadd.f32 %v2375, 1.0
    %v2385 = vadd.f32 %v2377, 1.0
    %v2386 = vrcp.pop %v2378
    %v2387 = vmul.f32 1.0, %v2386
    %v2388 = vrcp.pop %v2379
    %v2389 = vmul.f32 1.0, %v2388
    %v2390 = vrcp.pop %v2380
    %v2391 = vmul.f32 1.0, %v2390
    %v2392 = vrcp.pop %v2381
    %v2393 = vmul.f32 1.0, %v2392
    %v2394 = vrcp.pop %v2382
    %v2395 = vmul.f32 1.0, %v2394
    %v2396 = vrcp.pop %v2383
    %v2397 = vmul.f32 1.0, %v2396
    %v2398 = vrcp.pop %v2384
    %v2399 = vmul.f32 1.0, %v2398
    %v2400 = vrcp.pop %v2385
    %v2401 = vmul.f32 1.0, %v2400
    %v2410 = vcombine.low %v2387, %v2389
    %v2411 = vcombine.low %v2391, %v2393
    %v2412 = vcombine.low %v2395, %v2397
    %v2413 = vcombine.low %v2399, %v2401
    %v2415 = vunpack.c.l.s4 1966171168
    %v2416 = vunpack.c.0.s8 %v2415
    %v2417 = vlaneseq
    %v2418 = vshrl.u32 %v2417, 7
    %v2419 = vsub.s32 %v2416, %v2418
    %v2420 = vrot.slane %v2410, %v2419
    %v2422 = vunpack.c.l.s4 1966171168
    %v2423 = vunpack.c.0.s8 %v2422
    %v2424 = vlaneseq
    %v2425 = vshrl.u32 %v2424, 7
    %v2426 = vsub.s32 %v2423, %v2425
    %v2427 = vrot.slane %v2411, %v2426
    %v2429 = vunpack.c.l.s4 1966171168
    %v2430 = vunpack.c.0.s8 %v2429
    %v2431 = vlaneseq
    %v2432 = vshrl.u32 %v2431, 7
    %v2433 = vsub.s32 %v2430, %v2432
    %v2434 = vrot.slane %v2412, %v2433
    %v2436 = vunpack.c.l.s4 1966171168
    %v2437 = vunpack.c.0.s8 %v2436
    %v2438 = vlaneseq
    %v2439 = vshrl.u32 %v2438, 7
    %v2440 = vsub.s32 %v2437, %v2439
    %v2441 = vrot.slane %v2413, %v2440
    %v2442 = vcombine.low %v2420, %v2427
    %v2443 = vcombine.low %v2434, %v2441
    %v2445 = vunpack.c.l.s4 1966171168
    %v2446 = vunpack.c.0.s8 %v2445
    %v2447 = vlaneseq
    %v2448 = vshrl.u32 %v2447, 7
    %v2449 = vsub.s32 %v2446, %v2448
    %v2450 = vrot.slane %v2442, %v2449
    %v2452 = vunpack.c.l.s4 1966171168
    %v2453 = vunpack.c.0.s8 %v2452
    %v2454 = vlaneseq
    %v2455 = vshrl.u32 %v2454, 7
    %v2456 = vsub.s32 %v2453, %v2455
    %v2457 = vrot.slane %v2443, %v2456
    %v2458 = vcombine.low %v2450, %v2457
    %2460 = vst [vmem:[#allocation3] sm:$0xff] %v2458
    // Predicated region
    $region30: #{_forward_jit.1} parent=1 // pred_check
      _
    $region31: #{_forward_jit.1} parent=1 // pred_check_branch
      %2462 = sbr.rel (0) target = $region33
    $region32: #{_forward_jit.1} parent=1 // pred_region
      %s2464 = ssub.s32 128, 128
      %2465 = vsyncadd [#allocation4], %s2464
      %s2467 = sshll.u32 [#allocation3], 4
      %s2468 = int_to_ptr.vmem [resolvable:$true] %s2467
      %2470 = dma.vmem_to_hbm [thread:$0]  %s2468, 128, %s7, [#allocation4]
    $region33: #{_forward_jit.1} parent=1 // pred_fallthru
      _
    // Predicated region
    $region34: #{_forward_jit.1} parent=1 // pred_check
      _
    $region35: #{_forward_jit.1} parent=1 // pred_check_branch
      %2472 = sbr.rel (0) target = $region37
    $region36: #{_forward_jit.1} parent=1 // pred_region
      %2473 = dma.done [#allocation4], 128
    $region37: #{_forward_jit.1} parent=1 // pred_fallthru
      _
    %2474 = vsyncpa [#allocation4], 1

</llo_original>
